<compile_context>
chip_gen: v6e
topology: v6e:2x2x1
jax: 0.10.0
libtpu: 0.0.40
codegen_flags: <defaults>
</compile_context>

<pallas_src>
import jax
import jax.numpy as jnp
import numpy as np
from jax import lax
from jax.experimental import pallas as pl
from jax.experimental.pallas import tpu as pltpu

KSIZE = 3
TAPS = KSIZE ** 3  # 27


def _round_up(x, n):
    return (x + n - 1) // n * n


# ------------------------------ Pallas kernel -------------------------------

def _make_up_block_kernel(dsz, hsz, wsz, cp, k_pad):
    """Fused conv1+ReLU+conv2+ReLU kernel for a single batch element."""
    hw = hsz * wsz
    dhw = dsz * hw
    k_tap = TAPS * cp          # im2col tap rows
    tail = k_pad - k_tap       # bias row (all ones) + zero padding rows

    def kernel(x_ref, w1_ref, w2_ref, o_ref, slab_ref):
        # x_ref   : (cp,   dhw)  f32   one batch element, channels padded to cp
        # w*_ref  : (cout, k_pad) bf16  folded conv weights (+bias column)
        # o_ref   : (cout, dhw)  f32   relu(conv2(relu(conv1(x)))) for this batch
        # slab_ref: (k_pad, dhw) f32   VMEM im2col slab, reused by both convs

        # ---- slab tail init: row k_tap is the all-ones bias row, rest zero ----
        row = lax.broadcasted_iota(jnp.int32, (tail, dhw), 0)
        slab_ref[pl.ds(k_tap, tail), :] = jnp.where(row == 0, 1.0, 0.0).astype(
            jnp.float32)

        # ---- elementary halo masks over the flattened (d, h, w) lane axis ----
        # position m = d*hw + h*wsz + w ; hsz, wsz are powers of two.
        pos = lax.broadcasted_iota(jnp.int32, (cp, dhw), 1)
        rem_hw = jnp.bitwise_and(pos, hw - 1)            # h*wsz + w
        rem_w = jnp.bitwise_and(pos, wsz - 1)            # w
        d_lo = pos >= hw                                 # d >= 1
        d_hi = pos < (dsz - 1) * hw                      # d <= D-2
        h_lo = rem_hw >= wsz                             # h >= 1
        h_hi = rem_hw < (hsz - 1) * wsz                  # h <= H-2
        w_lo = rem_w >= 1                                # w >= 1
        w_hi = rem_w < (wsz - 1)                         # w <= W-2

        def fill_taps(v):
            # Build the (27*cp, dhw) im2col block in slab_ref from the (cp, dhw)
            # activation v, entirely in VMEM: per tap one lane roll + halo select.
            t = 0
            for kd in range(KSIZE):
                for kh in range(KSIZE):
                    for kw in range(KSIZE):
                        od, oh, ow = kd - 1, kh - 1, kw - 1
                        shift = od * hw + oh * wsz + ow   # read offset along m
                        if shift == 0:
                            val = v
                        else:
                            # want val[m] = v[m + shift]  (== jnp.roll(v, -shift));
                            # wrapped positions are zeroed by the halo mask below.
                            val = pltpu.roll(v, (-shift) % dhw, axis=1)
                        conds = []
                        if od < 0: conds.append(d_lo)
                        if od > 0: conds.append(d_hi)
                        if oh < 0: conds.append(h_lo)
                        if oh > 0: conds.append(h_hi)
                        if ow < 0: conds.append(w_lo)
                        if ow > 0: conds.append(w_hi)
                        if conds:
                            m = conds[0]
                            for c in conds[1:]:
                                m = jnp.logical_and(m, c)
                            val = jnp.where(m, val, 0.0)
                        slab_ref[pl.ds(t * cp, cp), :] = val
                        t += 1

        def conv_relu(v, w_ref):
            fill_taps(v)
            a = slab_ref[...].astype(jnp.bfloat16)        # single folded-K operand
            y = jnp.dot(w_ref[...], a, preferred_element_type=jnp.float32)
            return jnp.maximum(y, 0.0)                    # bias already folded in

        y1 = conv_relu(x_ref[...], w1_ref)                # conv1 + ReLU (VMEM only)
        o_ref[...] = conv_relu(y1, w2_ref)                # conv2 + ReLU

    return kernel


# ------------------------------- JAX glue -----------------------------------

def _fold_weight(w, b, cp, k_pad):
    """PyTorch (Cout, Cin, 3,3,3) conv weight + bias -> (Cout, k_pad) bf16.

    Column layout matches the in-kernel slab rows:
      col = tap*cp + cin   with tap = kd*9 + kh*3 + kw,
      col = 27*cp          is the bias column (slab row is all ones),
      remaining columns are zero padding.
    """
    cout, cin = w.shape[0], w.shape[1]
    wf = jnp.transpose(w, (0, 2, 3, 4, 1)).reshape(cout, TAPS, cin)
    wf = jnp.pad(wf, ((0, 0), (0, 0), (0, cp - cin))).reshape(cout, TAPS * cp)
    cols = [wf, b.reshape(cout, 1).astype(wf.dtype)]
    ntail = k_pad - TAPS * cp - 1
    if ntail > 0:
        cols.append(jnp.zeros((cout, ntail), wf.dtype))
    return jnp.concatenate(cols, axis=1).astype(jnp.bfloat16)


def up_block_forward(x, w1, b1, w2, b2):
    """x: (N, Cin, D, H, W) f32 -> (N, Cout, 2D, 2H, 2W) f32 (== up_block.forward)."""
    n, cin, dsz, hsz, wsz = x.shape
    cout = w1.shape[0]
    dhw = dsz * hsz * wsz
    # In-kernel halo masks use bitwise tricks -> need power-of-two H, W.
    assert hsz & (hsz - 1) == 0 and wsz & (wsz - 1) == 0, "H, W must be powers of two"
    assert dhw % 128 == 0, "flattened spatial size must be lane aligned"

    cp = _round_up(max(cin, cout), 8)          # channel padding (f32 sublane tile)
    k_pad = _round_up(TAPS * cp + 1, 128)      # folded contraction depth (+bias row)

    # Tiny XLA-side prep (a few KB): channel-pad x, fold weights + bias.  The
    # 27x im2col expansion itself happens inside the kernel, in VMEM only.
    x_p = jnp.pad(x.reshape(n, cin, dhw).astype(jnp.float32),
                  ((0, 0), (0, cp - cin), (0, 0)))
    w1f = _fold_weight(w1, b1, cp, k_pad)
    w2f = _fold_weight(w2, b2, cp, k_pad)

    kernel = _make_up_block_kernel(dsz, hsz, wsz, cp, k_pad)

    flops = 2 * 2 * k_pad * dhw * cout * n
    bytes_accessed = (x_p.size * 4 + (w1f.size + w2f.size) * 2
                      + n * cout * dhw * 4)

    y = pl.pallas_call(
        kernel,
        out_shape=jax.ShapeDtypeStruct((n, cout, dhw), jnp.float32),
        grid=(n,),                                   # one step per batch element
        in_specs=[
            pl.BlockSpec((None, cp, dhw), lambda i: (i, 0, 0)),
            pl.BlockSpec((cout, k_pad), lambda i: (0, 0)),
            pl.BlockSpec((cout, k_pad), lambda i: (0, 0)),
        ],
        out_specs=pl.BlockSpec((None, cout, dhw), lambda i: (i, 0, 0)),
        scratch_shapes=[pltpu.VMEM((k_pad, dhw), jnp.float32)],
        compiler_params=pltpu.CompilerParams(
            dimension_semantics=("parallel",),       # 2 steps -> both v7x TCs
        ),
        cost_estimate=pl.CostEstimate(
            flops=flops, transcendentals=0, bytes_accessed=bytes_accessed),
    )(x_p, w1f, w2f)

    # conv_transpose3d with the fixed repeated-identity weight at stride 2 is
    # exactly a 2x nearest-neighbour upsample.  The duplicated 8x output write
    # below is the only remaining XLA epilogue (the final reshape is a free view).
    y = y.reshape(n, cout, dsz, hsz, wsz)
    y = jnp.broadcast_to(y[:, :, :, None, :, None, :, None],
                         (n, cout, dsz, 2, hsz, 2, wsz, 2))
    return y.reshape(n, cout, 2 * dsz, 2 * hsz, 2 * wsz)


# --------------------------- pure-JAX reference -----------------------------

def reference_forward(x, w1, b1, w2, b2):
    dn = lax.conv_dimension_numbers(x.shape, w1.shape, ('NCDHW', 'OIDHW', 'NCDHW'))
    y = lax.conv_general_dilated(x, w1, (1, 1, 1), [(1, 1)] * 3,
                                 dimension_numbers=dn,
                                 precision=lax.Precision.HIGHEST)
    y = jax.nn.relu(y + b1[None, :, None, None, None])
    y = lax.conv_general_dilated(y, w2, (1, 1, 1), [(1, 1)] * 3,
                                 dimension_numbers=dn,
                                 precision=lax.Precision.HIGHEST)
    y = jax.nn.relu(y + b2[None, :, None, None, None])
    # conv_transpose3d with repeated identity weights == 2x nearest upsample
    y = jnp.repeat(jnp.repeat(jnp.repeat(y, 2, axis=2), 2, axis=3), 2, axis=4)
    return y


# ----------------------------------- main -----------------------------------

if __name__ == "__main__":
    N, CIN, COUT, D, H, W = 2, 4, 8, 8, 8, 8

    key = jax.random.PRNGKey(0)
    kx, k1, k2, k3, k4 = jax.random.split(key, 5)
    x = jax.random.normal(kx, (N, CIN, D, H, W), jnp.float32)
    w1 = jax.random.normal(k1, (COUT, CIN, 3, 3, 3), jnp.float32) * 0.1
    b1 = jax.random.normal(k2, (COUT,), jnp.float32) * 0.1
    w2 = jax.random.normal(k3, (COUT, COUT, 3, 3, 3), jnp.float32) * 0.1
    b2 = jax.random.normal(k4, (COUT,), jnp.float32) * 0.1

    fwd = jax.jit(up_block_forward)
    out = jax.block_until_ready(fwd(x, w1, b1, w2, b2))

    assert out.shape == (N, COUT, 2 * D, 2 * H, 2 * W), out.shape
    ref = reference_forward(x, w1, b1, w2, b2)
    # tolerance covers bf16 MXU inputs (f32 accumulation) through two chained
    # 3x3x3 convs vs. the f32 HIGHEST-precision reference
    np.testing.assert_allclose(np.asarray(out), np.asarray(ref), rtol=2e-2, atol=5e-2)

    print("KERNEL_OK")
</pallas_src>

<mosaic_0001>
module attributes {stable_mosaic.version = 11 : i64} {
  func.func @kernel(%arg0: i32, %arg1: memref<1x8x512xf32, #tpu.memory_space<vmem>>, %arg2: memref<8x256xbf16, #tpu.memory_space<vmem>>, %arg3: memref<8x256xbf16, #tpu.memory_space<vmem>>, %arg4: memref<1x8x512xf32, #tpu.memory_space<vmem>>, %arg5: memref<256x512xf32, #tpu.memory_space<vmem>>) attributes {dimension_semantics = [#tpu.dimension_semantics<parallel>], iteration_bounds = array<i64: 2>, scalar_prefetch = 0 : i64, scratch_operands = 1 : i64, tpu.core_type = #tpu.core_type<tc>, window_params = [{transform_indices = @transform_0, window_bounds = array<i64: 1, 8, 512>}, {pipeline_mode = #tpu.pipeline_mode<synchronous>, transform_indices = @transform_1, window_bounds = array<i64: 8, 256>}, {pipeline_mode = #tpu.pipeline_mode<synchronous>, transform_indices = @transform_2, window_bounds = array<i64: 8, 256>}, {transform_indices = @transform_3, window_bounds = array<i64: 1, 8, 512>}]} {
    %0 = tpu.iota {dimensions = array<i32: 0>} : vector<40x512xi32>
    %c0_i32 = arith.constant 0 : i32
    %1 = vector.broadcast %c0_i32 : i32 to vector<40x512xi32>
    %2 = arith.cmpi eq, %0, %1 : vector<40x512xi32>
    %cst = arith.constant 1.000000e+00 : f32
    %cst_0 = arith.constant 0.000000e+00 : f32
    %3 = vector.broadcast %cst : f32 to vector<40x512xf32>
    %4 = vector.broadcast %cst_0 : f32 to vector<40x512xf32>
    %5 = arith.select %2, %3, %4 : vector<40x512xi1>, vector<40x512xf32>
    %c216 = arith.constant 216 : index
    %c0 = arith.constant 0 : index
    %6 = vector.load %arg5[%c216, %c0] : memref<256x512xf32, #tpu.memory_space<vmem>>, vector<40x512xf32>
    tpu.vector_store %arg5[%c216, %c0], %5 {strides = array<i32>} : memref<256x512xf32, #tpu.memory_space<vmem>>, vector<40x512xf32>,
    %7 = tpu.iota {dimensions = array<i32: 1>} : vector<8x512xi32>
    %c63_i32 = arith.constant 63 : i32
    %8 = vector.broadcast %c63_i32 : i32 to vector<8x512xi32>
    %9 = arith.andi %7, %8 : vector<8x512xi32>
    %c7_i32 = arith.constant 7 : i32
    %10 = vector.broadcast %c7_i32 : i32 to vector<8x512xi32>
    %11 = arith.andi %7, %10 : vector<8x512xi32>
    %c64_i32 = arith.constant 64 : i32
    %12 = vector.broadcast %c64_i32 : i32 to vector<8x512xi32>
    %13 = arith.cmpi sge, %7, %12 : vector<8x512xi32>
    %c448_i32 = arith.constant 448 : i32
    %14 = vector.broadcast %c448_i32 : i32 to vector<8x512xi32>
    %15 = arith.cmpi slt, %7, %14 : vector<8x512xi32>
    %c8_i32 = arith.constant 8 : i32
    %16 = vector.broadcast %c8_i32 : i32 to vector<8x512xi32>
    %17 = arith.cmpi sge, %9, %16 : vector<8x512xi32>
    %c56_i32 = arith.constant 56 : i32
    %18 = vector.broadcast %c56_i32 : i32 to vector<8x512xi32>
    %19 = arith.cmpi slt, %9, %18 : vector<8x512xi32>
    %c1_i32 = arith.constant 1 : i32
    %20 = vector.broadcast %c1_i32 : i32 to vector<8x512xi32>
    %21 = arith.cmpi sge, %11, %20 : vector<8x512xi32>
    %c7_i32_1 = arith.constant 7 : i32
    %22 = vector.broadcast %c7_i32_1 : i32 to vector<8x512xi32>
    %23 = arith.cmpi slt, %11, %22 : vector<8x512xi32>
    %c0_2 = arith.constant 0 : index
    %c0_3 = arith.constant 0 : index
    %c0_4 = arith.constant 0 : index
    %24 = vector.load %arg1[%c0_2, %c0_3, %c0_4] : memref<1x8x512xf32, #tpu.memory_space<vmem>>, vector<1x8x512xf32>
    %25 = vector.shape_cast %24 : vector<1x8x512xf32> to vector<8x512xf32>
    %c73_i32 = arith.constant 73 : i32
    %26 = tpu.dynamic_rotate %25 by %c73_i32 dim 1 : vector<8x512xf32>, i32 -> vector<8x512xf32>
    %27 = arith.andi %13, %17 : vector<8x512xi1>
    %28 = arith.andi %27, %21 : vector<8x512xi1>
    %cst_5 = arith.constant 0.000000e+00 : f32
    %29 = vector.broadcast %cst_5 : f32 to vector<8x512xf32>
    %30 = arith.select %28, %26, %29 : vector<8x512xi1>, vector<8x512xf32>
    %c0_6 = arith.constant 0 : index
    %c0_7 = arith.constant 0 : index
    %31 = vector.load %arg5[%c0_6, %c0_7] : memref<256x512xf32, #tpu.memory_space<vmem>>, vector<8x512xf32>
    tpu.vector_store %arg5[%c0_6, %c0_7], %30 {strides = array<i32>} : memref<256x512xf32, #tpu.memory_space<vmem>>, vector<8x512xf32>,
    %c72_i32 = arith.constant 72 : i32
    %32 = tpu.dynamic_rotate %25 by %c72_i32 dim 1 : vector<8x512xf32>, i32 -> vector<8x512xf32>
    %33 = arith.andi %13, %17 : vector<8x512xi1>
    %cst_8 = arith.constant 0.000000e+00 : f32
    %34 = vector.broadcast %cst_8 : f32 to vector<8x512xf32>
    %35 = arith.select %33, %32, %34 : vector<8x512xi1>, vector<8x512xf32>
    %c8 = arith.constant 8 : index
    %c0_9 = arith.constant 0 : index
    %36 = vector.load %arg5[%c8, %c0_9] : memref<256x512xf32, #tpu.memory_space<vmem>>, vector<8x512xf32>
    tpu.vector_store %arg5[%c8, %c0_9], %35 {strides = array<i32>} : memref<256x512xf32, #tpu.memory_space<vmem>>, vector<8x512xf32>,
    %c71_i32 = arith.constant 71 : i32
    %37 = tpu.dynamic_rotate %25 by %c71_i32 dim 1 : vector<8x512xf32>, i32 -> vector<8x512xf32>
    %38 = arith.andi %13, %17 : vector<8x512xi1>
    %39 = arith.andi %38, %23 : vector<8x512xi1>
    %cst_10 = arith.constant 0.000000e+00 : f32
    %40 = vector.broadcast %cst_10 : f32 to vector<8x512xf32>
    %41 = arith.select %39, %37, %40 : vector<8x512xi1>, vector<8x512xf32>
    %c16 = arith.constant 16 : index
    %c0_11 = arith.constant 0 : index
    %42 = vector.load %arg5[%c16, %c0_11] : memref<256x512xf32, #tpu.memory_space<vmem>>, vector<8x512xf32>
    tpu.vector_store %arg5[%c16, %c0_11], %41 {strides = array<i32>} : memref<256x512xf32, #tpu.memory_space<vmem>>, vector<8x512xf32>,
    %c65_i32 = arith.constant 65 : i32
    %43 = tpu.dynamic_rotate %25 by %c65_i32 dim 1 : vector<8x512xf32>, i32 -> vector<8x512xf32>
    %44 = arith.andi %13, %21 : vector<8x512xi1>
    %cst_12 = arith.constant 0.000000e+00 : f32
    %45 = vector.broadcast %cst_12 : f32 to vector<8x512xf32>
    %46 = arith.select %44, %43, %45 : vector<8x512xi1>, vector<8x512xf32>
    %c24 = arith.constant 24 : index
    %c0_13 = arith.constant 0 : index
    %47 = vector.load %arg5[%c24, %c0_13] : memref<256x512xf32, #tpu.memory_space<vmem>>, vector<8x512xf32>
    tpu.vector_store %arg5[%c24, %c0_13], %46 {strides = array<i32>} : memref<256x512xf32, #tpu.memory_space<vmem>>, vector<8x512xf32>,
    %c64_i32_14 = arith.constant 64 : i32
    %48 = tpu.dynamic_rotate %25 by %c64_i32_14 dim 1 : vector<8x512xf32>, i32 -> vector<8x512xf32>
    %cst_15 = arith.constant 0.000000e+00 : f32
    %49 = vector.broadcast %cst_15 : f32 to vector<8x512xf32>
    %50 = arith.select %13, %48, %49 : vector<8x512xi1>, vector<8x512xf32>
    %c32 = arith.constant 32 : index
    %c0_16 = arith.constant 0 : index
    %51 = vector.load %arg5[%c32, %c0_16] : memref<256x512xf32, #tpu.memory_space<vmem>>, vector<8x512xf32>
    tpu.vector_store %arg5[%c32, %c0_16], %50 {strides = array<i32>} : memref<256x512xf32, #tpu.memory_space<vmem>>, vector<8x512xf32>,
    %c63_i32_17 = arith.constant 63 : i32
    %52 = tpu.dynamic_rotate %25 by %c63_i32_17 dim 1 : vector<8x512xf32>, i32 -> vector<8x512xf32>
    %53 = arith.andi %13, %23 : vector<8x512xi1>
    %cst_18 = arith.constant 0.000000e+00 : f32
    %54 = vector.broadcast %cst_18 : f32 to vector<8x512xf32>
    %55 = arith.select %53, %52, %54 : vector<8x512xi1>, vector<8x512xf32>
    %c40 = arith.constant 40 : index
    %c0_19 = arith.constant 0 : index
    %56 = vector.load %arg5[%c40, %c0_19] : memref<256x512xf32, #tpu.memory_space<vmem>>, vector<8x512xf32>
    tpu.vector_store %arg5[%c40, %c0_19], %55 {strides = array<i32>} : memref<256x512xf32, #tpu.memory_space<vmem>>, vector<8x512xf32>,
    %c57_i32 = arith.constant 57 : i32
    %57 = tpu.dynamic_rotate %25 by %c57_i32 dim 1 : vector<8x512xf32>, i32 -> vector<8x512xf32>
    %58 = arith.andi %13, %19 : vector<8x512xi1>
    %59 = arith.andi %58, %21 : vector<8x512xi1>
    %cst_20 = arith.constant 0.000000e+00 : f32
    %60 = vector.broadcast %cst_20 : f32 to vector<8x512xf32>
    %61 = arith.select %59, %57, %60 : vector<8x512xi1>, vector<8x512xf32>
    %c48 = arith.constant 48 : index
    %c0_21 = arith.constant 0 : index
    %62 = vector.load %arg5[%c48, %c0_21] : memref<256x512xf32, #tpu.memory_space<vmem>>, vector<8x512xf32>
    tpu.vector_store %arg5[%c48, %c0_21], %61 {strides = array<i32>} : memref<256x512xf32, #tpu.memory_space<vmem>>, vector<8x512xf32>,
    %c56_i32_22 = arith.constant 56 : i32
    %63 = tpu.dynamic_rotate %25 by %c56_i32_22 dim 1 : vector<8x512xf32>, i32 -> vector<8x512xf32>
    %64 = arith.andi %13, %19 : vector<8x512xi1>
    %cst_23 = arith.constant 0.000000e+00 : f32
    %65 = vector.broadcast %cst_23 : f32 to vector<8x512xf32>
    %66 = arith.select %64, %63, %65 : vector<8x512xi1>, vector<8x512xf32>
    %c56 = arith.constant 56 : index
    %c0_24 = arith.constant 0 : index
    %67 = vector.load %arg5[%c56, %c0_24] : memref<256x512xf32, #tpu.memory_space<vmem>>, vector<8x512xf32>
    tpu.vector_store %arg5[%c56, %c0_24], %66 {strides = array<i32>} : memref<256x512xf32, #tpu.memory_space<vmem>>, vector<8x512xf32>,
    %c55_i32 = arith.constant 55 : i32
    %68 = tpu.dynamic_rotate %25 by %c55_i32 dim 1 : vector<8x512xf32>, i32 -> vector<8x512xf32>
    %69 = arith.andi %13, %19 : vector<8x512xi1>
    %70 = arith.andi %69, %23 : vector<8x512xi1>
    %cst_25 = arith.constant 0.000000e+00 : f32
    %71 = vector.broadcast %cst_25 : f32 to vector<8x512xf32>
    %72 = arith.select %70, %68, %71 : vector<8x512xi1>, vector<8x512xf32>
    %c64 = arith.constant 64 : index
    %c0_26 = arith.constant 0 : index
    %73 = vector.load %arg5[%c64, %c0_26] : memref<256x512xf32, #tpu.memory_space<vmem>>, vector<8x512xf32>
    tpu.vector_store %arg5[%c64, %c0_26], %72 {strides = array<i32>} : memref<256x512xf32, #tpu.memory_space<vmem>>, vector<8x512xf32>,
    %c9_i32 = arith.constant 9 : i32
    %74 = tpu.dynamic_rotate %25 by %c9_i32 dim 1 : vector<8x512xf32>, i32 -> vector<8x512xf32>
    %75 = arith.andi %17, %21 : vector<8x512xi1>
    %cst_27 = arith.constant 0.000000e+00 : f32
    %76 = vector.broadcast %cst_27 : f32 to vector<8x512xf32>
    %77 = arith.select %75, %74, %76 : vector<8x512xi1>, vector<8x512xf32>
    %c72 = arith.constant 72 : index
    %c0_28 = arith.constant 0 : index
    %78 = vector.load %arg5[%c72, %c0_28] : memref<256x512xf32, #tpu.memory_space<vmem>>, vector<8x512xf32>
    tpu.vector_store %arg5[%c72, %c0_28], %77 {strides = array<i32>} : memref<256x512xf32, #tpu.memory_space<vmem>>, vector<8x512xf32>,
    %c8_i32_29 = arith.constant 8 : i32
    %79 = tpu.dynamic_rotate %25 by %c8_i32_29 dim 1 : vector<8x512xf32>, i32 -> vector<8x512xf32>
    %cst_30 = arith.constant 0.000000e+00 : f32
    %80 = vector.broadcast %cst_30 : f32 to vector<8x512xf32>
    %81 = arith.select %17, %79, %80 : vector<8x512xi1>, vector<8x512xf32>
    %c80 = arith.constant 80 : index
    %c0_31 = arith.constant 0 : index
    %82 = vector.load %arg5[%c80, %c0_31] : memref<256x512xf32, #tpu.memory_space<vmem>>, vector<8x512xf32>
    tpu.vector_store %arg5[%c80, %c0_31], %81 {strides = array<i32>} : memref<256x512xf32, #tpu.memory_space<vmem>>, vector<8x512xf32>,
    %c7_i32_32 = arith.constant 7 : i32
    %83 = tpu.dynamic_rotate %25 by %c7_i32_32 dim 1 : vector<8x512xf32>, i32 -> vector<8x512xf32>
    %84 = arith.andi %17, %23 : vector<8x512xi1>
    %cst_33 = arith.constant 0.000000e+00 : f32
    %85 = vector.broadcast %cst_33 : f32 to vector<8x512xf32>
    %86 = arith.select %84, %83, %85 : vector<8x512xi1>, vector<8x512xf32>
    %c88 = arith.constant 88 : index
    %c0_34 = arith.constant 0 : index
    %87 = vector.load %arg5[%c88, %c0_34] : memref<256x512xf32, #tpu.memory_space<vmem>>, vector<8x512xf32>
    tpu.vector_store %arg5[%c88, %c0_34], %86 {strides = array<i32>} : memref<256x512xf32, #tpu.memory_space<vmem>>, vector<8x512xf32>,
    %c1_i32_35 = arith.constant 1 : i32
    %88 = tpu.dynamic_rotate %25 by %c1_i32_35 dim 1 : vector<8x512xf32>, i32 -> vector<8x512xf32>
    %cst_36 = arith.constant 0.000000e+00 : f32
    %89 = vector.broadcast %cst_36 : f32 to vector<8x512xf32>
    %90 = arith.select %21, %88, %89 : vector<8x512xi1>, vector<8x512xf32>
    %c96 = arith.constant 96 : index
    %c0_37 = arith.constant 0 : index
    %91 = vector.load %arg5[%c96, %c0_37] : memref<256x512xf32, #tpu.memory_space<vmem>>, vector<8x512xf32>
    tpu.vector_store %arg5[%c96, %c0_37], %90 {strides = array<i32>} : memref<256x512xf32, #tpu.memory_space<vmem>>, vector<8x512xf32>,
    %c104 = arith.constant 104 : index
    %c0_38 = arith.constant 0 : index
    %92 = vector.load %arg5[%c104, %c0_38] : memref<256x512xf32, #tpu.memory_space<vmem>>, vector<8x512xf32>
    tpu.vector_store %arg5[%c104, %c0_38], %25 {strides = array<i32>} : memref<256x512xf32, #tpu.memory_space<vmem>>, vector<8x512xf32>,
    %c511_i32 = arith.constant 511 : i32
    %93 = tpu.dynamic_rotate %25 by %c511_i32 dim 1 : vector<8x512xf32>, i32 -> vector<8x512xf32>
    %cst_39 = arith.constant 0.000000e+00 : f32
    %94 = vector.broadcast %cst_39 : f32 to vector<8x512xf32>
    %95 = arith.select %23, %93, %94 : vector<8x512xi1>, vector<8x512xf32>
    %c112 = arith.constant 112 : index
    %c0_40 = arith.constant 0 : index
    %96 = vector.load %arg5[%c112, %c0_40] : memref<256x512xf32, #tpu.memory_space<vmem>>, vector<8x512xf32>
    tpu.vector_store %arg5[%c112, %c0_40], %95 {strides = array<i32>} : memref<256x512xf32, #tpu.memory_space<vmem>>, vector<8x512xf32>,
    %c505_i32 = arith.constant 505 : i32
    %97 = tpu.dynamic_rotate %25 by %c505_i32 dim 1 : vector<8x512xf32>, i32 -> vector<8x512xf32>
    %98 = arith.andi %19, %21 : vector<8x512xi1>
    %cst_41 = arith.constant 0.000000e+00 : f32
    %99 = vector.broadcast %cst_41 : f32 to vector<8x512xf32>
    %100 = arith.select %98, %97, %99 : vector<8x512xi1>, vector<8x512xf32>
    %c120 = arith.constant 120 : index
    %c0_42 = arith.constant 0 : index
    %101 = vector.load %arg5[%c120, %c0_42] : memref<256x512xf32, #tpu.memory_space<vmem>>, vector<8x512xf32>
    tpu.vector_store %arg5[%c120, %c0_42], %100 {strides = array<i32>} : memref<256x512xf32, #tpu.memory_space<vmem>>, vector<8x512xf32>,
    %c504_i32 = arith.constant 504 : i32
    %102 = tpu.dynamic_rotate %25 by %c504_i32 dim 1 : vector<8x512xf32>, i32 -> vector<8x512xf32>
    %cst_43 = arith.constant 0.000000e+00 : f32
    %103 = vector.broadcast %cst_43 : f32 to vector<8x512xf32>
    %104 = arith.select %19, %102, %103 : vector<8x512xi1>, vector<8x512xf32>
    %c128 = arith.constant 128 : index
    %c0_44 = arith.constant 0 : index
    %105 = vector.load %arg5[%c128, %c0_44] : memref<256x512xf32, #tpu.memory_space<vmem>>, vector<8x512xf32>
    tpu.vector_store %arg5[%c128, %c0_44], %104 {strides = array<i32>} : memref<256x512xf32, #tpu.memory_space<vmem>>, vector<8x512xf32>,
    %c503_i32 = arith.constant 503 : i32
    %106 = tpu.dynamic_rotate %25 by %c503_i32 dim 1 : vector<8x512xf32>, i32 -> vector<8x512xf32>
    %107 = arith.andi %19, %23 : vector<8x512xi1>
    %cst_45 = arith.constant 0.000000e+00 : f32
    %108 = vector.broadcast %cst_45 : f32 to vector<8x512xf32>
    %109 = arith.select %107, %106, %108 : vector<8x512xi1>, vector<8x512xf32>
    %c136 = arith.constant 136 : index
    %c0_46 = arith.constant 0 : index
    %110 = vector.load %arg5[%c136, %c0_46] : memref<256x512xf32, #tpu.memory_space<vmem>>, vector<8x512xf32>
    tpu.vector_store %arg5[%c136, %c0_46], %109 {strides = array<i32>} : memref<256x512xf32, #tpu.memory_space<vmem>>, vector<8x512xf32>,
    %c457_i32 = arith.constant 457 : i32
    %111 = tpu.dynamic_rotate %25 by %c457_i32 dim 1 : vector<8x512xf32>, i32 -> vector<8x512xf32>
    %112 = arith.andi %15, %17 : vector<8x512xi1>
    %113 = arith.andi %112, %21 : vector<8x512xi1>
    %cst_47 = arith.constant 0.000000e+00 : f32
    %114 = vector.broadcast %cst_47 : f32 to vector<8x512xf32>
    %115 = arith.select %113, %111, %114 : vector<8x512xi1>, vector<8x512xf32>
    %c144 = arith.constant 144 : index
    %c0_48 = arith.constant 0 : index
    %116 = vector.load %arg5[%c144, %c0_48] : memref<256x512xf32, #tpu.memory_space<vmem>>, vector<8x512xf32>
    tpu.vector_store %arg5[%c144, %c0_48], %115 {strides = array<i32>} : memref<256x512xf32, #tpu.memory_space<vmem>>, vector<8x512xf32>,
    %c456_i32 = arith.constant 456 : i32
    %117 = tpu.dynamic_rotate %25 by %c456_i32 dim 1 : vector<8x512xf32>, i32 -> vector<8x512xf32>
    %118 = arith.andi %15, %17 : vector<8x512xi1>
    %cst_49 = arith.constant 0.000000e+00 : f32
    %119 = vector.broadcast %cst_49 : f32 to vector<8x512xf32>
    %120 = arith.select %118, %117, %119 : vector<8x512xi1>, vector<8x512xf32>
    %c152 = arith.constant 152 : index
    %c0_50 = arith.constant 0 : index
    %121 = vector.load %arg5[%c152, %c0_50] : memref<256x512xf32, #tpu.memory_space<vmem>>, vector<8x512xf32>
    tpu.vector_store %arg5[%c152, %c0_50], %120 {strides = array<i32>} : memref<256x512xf32, #tpu.memory_space<vmem>>, vector<8x512xf32>,
    %c455_i32 = arith.constant 455 : i32
    %122 = tpu.dynamic_rotate %25 by %c455_i32 dim 1 : vector<8x512xf32>, i32 -> vector<8x512xf32>
    %123 = arith.andi %15, %17 : vector<8x512xi1>
    %124 = arith.andi %123, %23 : vector<8x512xi1>
    %cst_51 = arith.constant 0.000000e+00 : f32
    %125 = vector.broadcast %cst_51 : f32 to vector<8x512xf32>
    %126 = arith.select %124, %122, %125 : vector<8x512xi1>, vector<8x512xf32>
    %c160 = arith.constant 160 : index
    %c0_52 = arith.constant 0 : index
    %127 = vector.load %arg5[%c160, %c0_52] : memref<256x512xf32, #tpu.memory_space<vmem>>, vector<8x512xf32>
    tpu.vector_store %arg5[%c160, %c0_52], %126 {strides = array<i32>} : memref<256x512xf32, #tpu.memory_space<vmem>>, vector<8x512xf32>,
    %c449_i32 = arith.constant 449 : i32
    %128 = tpu.dynamic_rotate %25 by %c449_i32 dim 1 : vector<8x512xf32>, i32 -> vector<8x512xf32>
    %129 = arith.andi %15, %21 : vector<8x512xi1>
    %cst_53 = arith.constant 0.000000e+00 : f32
    %130 = vector.broadcast %cst_53 : f32 to vector<8x512xf32>
    %131 = arith.select %129, %128, %130 : vector<8x512xi1>, vector<8x512xf32>
    %c168 = arith.constant 168 : index
    %c0_54 = arith.constant 0 : index
    %132 = vector.load %arg5[%c168, %c0_54] : memref<256x512xf32, #tpu.memory_space<vmem>>, vector<8x512xf32>
    tpu.vector_store %arg5[%c168, %c0_54], %131 {strides = array<i32>} : memref<256x512xf32, #tpu.memory_space<vmem>>, vector<8x512xf32>,
    %c448_i32_55 = arith.constant 448 : i32
    %133 = tpu.dynamic_rotate %25 by %c448_i32_55 dim 1 : vector<8x512xf32>, i32 -> vector<8x512xf32>
    %cst_56 = arith.constant 0.000000e+00 : f32
    %134 = vector.broadcast %cst_56 : f32 to vector<8x512xf32>
    %135 = arith.select %15, %133, %134 : vector<8x512xi1>, vector<8x512xf32>
    %c176 = arith.constant 176 : index
    %c0_57 = arith.constant 0 : index
    %136 = vector.load %arg5[%c176, %c0_57] : memref<256x512xf32, #tpu.memory_space<vmem>>, vector<8x512xf32>
    tpu.vector_store %arg5[%c176, %c0_57], %135 {strides = array<i32>} : memref<256x512xf32, #tpu.memory_space<vmem>>, vector<8x512xf32>,
    %c447_i32 = arith.constant 447 : i32
    %137 = tpu.dynamic_rotate %25 by %c447_i32 dim 1 : vector<8x512xf32>, i32 -> vector<8x512xf32>
    %138 = arith.andi %15, %23 : vector<8x512xi1>
    %cst_58 = arith.constant 0.000000e+00 : f32
    %139 = vector.broadcast %cst_58 : f32 to vector<8x512xf32>
    %140 = arith.select %138, %137, %139 : vector<8x512xi1>, vector<8x512xf32>
    %c184 = arith.constant 184 : index
    %c0_59 = arith.constant 0 : index
    %141 = vector.load %arg5[%c184, %c0_59] : memref<256x512xf32, #tpu.memory_space<vmem>>, vector<8x512xf32>
    tpu.vector_store %arg5[%c184, %c0_59], %140 {strides = array<i32>} : memref<256x512xf32, #tpu.memory_space<vmem>>, vector<8x512xf32>,
    %c441_i32 = arith.constant 441 : i32
    %142 = tpu.dynamic_rotate %25 by %c441_i32 dim 1 : vector<8x512xf32>, i32 -> vector<8x512xf32>
    %143 = arith.andi %15, %19 : vector<8x512xi1>
    %144 = arith.andi %143, %21 : vector<8x512xi1>
    %cst_60 = arith.constant 0.000000e+00 : f32
    %145 = vector.broadcast %cst_60 : f32 to vector<8x512xf32>
    %146 = arith.select %144, %142, %145 : vector<8x512xi1>, vector<8x512xf32>
    %c192 = arith.constant 192 : index
    %c0_61 = arith.constant 0 : index
    %147 = vector.load %arg5[%c192, %c0_61] : memref<256x512xf32, #tpu.memory_space<vmem>>, vector<8x512xf32>
    tpu.vector_store %arg5[%c192, %c0_61], %146 {strides = array<i32>} : memref<256x512xf32, #tpu.memory_space<vmem>>, vector<8x512xf32>,
    %c440_i32 = arith.constant 440 : i32
    %148 = tpu.dynamic_rotate %25 by %c440_i32 dim 1 : vector<8x512xf32>, i32 -> vector<8x512xf32>
    %149 = arith.andi %15, %19 : vector<8x512xi1>
    %cst_62 = arith.constant 0.000000e+00 : f32
    %150 = vector.broadcast %cst_62 : f32 to vector<8x512xf32>
    %151 = arith.select %149, %148, %150 : vector<8x512xi1>, vector<8x512xf32>
    %c200 = arith.constant 200 : index
    %c0_63 = arith.constant 0 : index
    %152 = vector.load %arg5[%c200, %c0_63] : memref<256x512xf32, #tpu.memory_space<vmem>>, vector<8x512xf32>
    tpu.vector_store %arg5[%c200, %c0_63], %151 {strides = array<i32>} : memref<256x512xf32, #tpu.memory_space<vmem>>, vector<8x512xf32>,
    %c439_i32 = arith.constant 439 : i32
    %153 = tpu.dynamic_rotate %25 by %c439_i32 dim 1 : vector<8x512xf32>, i32 -> vector<8x512xf32>
    %154 = arith.andi %15, %19 : vector<8x512xi1>
    %155 = arith.andi %154, %23 : vector<8x512xi1>
    %cst_64 = arith.constant 0.000000e+00 : f32
    %156 = vector.broadcast %cst_64 : f32 to vector<8x512xf32>
    %157 = arith.select %155, %153, %156 : vector<8x512xi1>, vector<8x512xf32>
    %c208 = arith.constant 208 : index
    %c0_65 = arith.constant 0 : index
    %158 = vector.load %arg5[%c208, %c0_65] : memref<256x512xf32, #tpu.memory_space<vmem>>, vector<8x512xf32>
    tpu.vector_store %arg5[%c208, %c0_65], %157 {strides = array<i32>} : memref<256x512xf32, #tpu.memory_space<vmem>>, vector<8x512xf32>,
    %c0_66 = arith.constant 0 : index
    %c0_67 = arith.constant 0 : index
    %159 = vector.load %arg5[%c0_66, %c0_67] : memref<256x512xf32, #tpu.memory_space<vmem>>, vector<256x512xf32>
    %160 = arith.truncf %159 : vector<256x512xf32> to vector<256x512xbf16>
    %c0_68 = arith.constant 0 : index
    %c0_69 = arith.constant 0 : index
    %161 = vector.load %arg2[%c0_68, %c0_69] : memref<8x256xbf16, #tpu.memory_space<vmem>>, vector<8x256xbf16>
    %cst_70 = arith.constant dense<0.000000e+00> : vector<8x512xf32>
    %162 = tpu.matmul %161, %160, %cst_70 {dimension_numbers = #tpu.dot_dimension_numbers<[1], [0], [0], [1], [0, 0, 1, 1], [], []>} : vector<8x256xbf16>, vector<256x512xbf16>, vector<8x512xf32> -> vector<8x512xf32>
    %cst_71 = arith.constant 0.000000e+00 : f32
    %163 = vector.broadcast %cst_71 : f32 to vector<8x512xf32>
    %164 = arith.maximumf %162, %163 : vector<8x512xf32>
    %c73_i32_72 = arith.constant 73 : i32
    %165 = tpu.dynamic_rotate %164 by %c73_i32_72 dim 1 : vector<8x512xf32>, i32 -> vector<8x512xf32>
    %166 = arith.andi %13, %17 : vector<8x512xi1>
    %167 = arith.andi %166, %21 : vector<8x512xi1>
    %cst_73 = arith.constant 0.000000e+00 : f32
    %168 = vector.broadcast %cst_73 : f32 to vector<8x512xf32>
    %169 = arith.select %167, %165, %168 : vector<8x512xi1>, vector<8x512xf32>
    %c0_74 = arith.constant 0 : index
    %c0_75 = arith.constant 0 : index
    %170 = vector.load %arg5[%c0_74, %c0_75] : memref<256x512xf32, #tpu.memory_space<vmem>>, vector<8x512xf32>
    tpu.vector_store %arg5[%c0_74, %c0_75], %169 {strides = array<i32>} : memref<256x512xf32, #tpu.memory_space<vmem>>, vector<8x512xf32>,
    %c72_i32_76 = arith.constant 72 : i32
    %171 = tpu.dynamic_rotate %164 by %c72_i32_76 dim 1 : vector<8x512xf32>, i32 -> vector<8x512xf32>
    %172 = arith.andi %13, %17 : vector<8x512xi1>
    %cst_77 = arith.constant 0.000000e+00 : f32
    %173 = vector.broadcast %cst_77 : f32 to vector<8x512xf32>
    %174 = arith.select %172, %171, %173 : vector<8x512xi1>, vector<8x512xf32>
    %c8_78 = arith.constant 8 : index
    %c0_79 = arith.constant 0 : index
    %175 = vector.load %arg5[%c8_78, %c0_79] : memref<256x512xf32, #tpu.memory_space<vmem>>, vector<8x512xf32>
    tpu.vector_store %arg5[%c8_78, %c0_79], %174 {strides = array<i32>} : memref<256x512xf32, #tpu.memory_space<vmem>>, vector<8x512xf32>,
    %c71_i32_80 = arith.constant 71 : i32
    %176 = tpu.dynamic_rotate %164 by %c71_i32_80 dim 1 : vector<8x512xf32>, i32 -> vector<8x512xf32>
    %177 = arith.andi %13, %17 : vector<8x512xi1>
    %178 = arith.andi %177, %23 : vector<8x512xi1>
    %cst_81 = arith.constant 0.000000e+00 : f32
    %179 = vector.broadcast %cst_81 : f32 to vector<8x512xf32>
    %180 = arith.select %178, %176, %179 : vector<8x512xi1>, vector<8x512xf32>
    %c16_82 = arith.constant 16 : index
    %c0_83 = arith.constant 0 : index
    %181 = vector.load %arg5[%c16_82, %c0_83] : memref<256x512xf32, #tpu.memory_space<vmem>>, vector<8x512xf32>
    tpu.vector_store %arg5[%c16_82, %c0_83], %180 {strides = array<i32>} : memref<256x512xf32, #tpu.memory_space<vmem>>, vector<8x512xf32>,
    %c65_i32_84 = arith.constant 65 : i32
    %182 = tpu.dynamic_rotate %164 by %c65_i32_84 dim 1 : vector<8x512xf32>, i32 -> vector<8x512xf32>
    %183 = arith.andi %13, %21 : vector<8x512xi1>
    %cst_85 = arith.constant 0.000000e+00 : f32
    %184 = vector.broadcast %cst_85 : f32 to vector<8x512xf32>
    %185 = arith.select %183, %182, %184 : vector<8x512xi1>, vector<8x512xf32>
    %c24_86 = arith.constant 24 : index
    %c0_87 = arith.constant 0 : index
    %186 = vector.load %arg5[%c24_86, %c0_87] : memref<256x512xf32, #tpu.memory_space<vmem>>, vector<8x512xf32>
    tpu.vector_store %arg5[%c24_86, %c0_87], %185 {strides = array<i32>} : memref<256x512xf32, #tpu.memory_space<vmem>>, vector<8x512xf32>,
    %c64_i32_88 = arith.constant 64 : i32
    %187 = tpu.dynamic_rotate %164 by %c64_i32_88 dim 1 : vector<8x512xf32>, i32 -> vector<8x512xf32>
    %cst_89 = arith.constant 0.000000e+00 : f32
    %188 = vector.broadcast %cst_89 : f32 to vector<8x512xf32>
    %189 = arith.select %13, %187, %188 : vector<8x512xi1>, vector<8x512xf32>
    %c32_90 = arith.constant 32 : index
    %c0_91 = arith.constant 0 : index
    %190 = vector.load %arg5[%c32_90, %c0_91] : memref<256x512xf32, #tpu.memory_space<vmem>>, vector<8x512xf32>
    tpu.vector_store %arg5[%c32_90, %c0_91], %189 {strides = array<i32>} : memref<256x512xf32, #tpu.memory_space<vmem>>, vector<8x512xf32>,
    %c63_i32_92 = arith.constant 63 : i32
    %191 = tpu.dynamic_rotate %164 by %c63_i32_92 dim 1 : vector<8x512xf32>, i32 -> vector<8x512xf32>
    %192 = arith.andi %13, %23 : vector<8x512xi1>
    %cst_93 = arith.constant 0.000000e+00 : f32
    %193 = vector.broadcast %cst_93 : f32 to vector<8x512xf32>
    %194 = arith.select %192, %191, %193 : vector<8x512xi1>, vector<8x512xf32>
    %c40_94 = arith.constant 40 : index
    %c0_95 = arith.constant 0 : index
    %195 = vector.load %arg5[%c40_94, %c0_95] : memref<256x512xf32, #tpu.memory_space<vmem>>, vector<8x512xf32>
    tpu.vector_store %arg5[%c40_94, %c0_95], %194 {strides = array<i32>} : memref<256x512xf32, #tpu.memory_space<vmem>>, vector<8x512xf32>,
    %c57_i32_96 = arith.constant 57 : i32
    %196 = tpu.dynamic_rotate %164 by %c57_i32_96 dim 1 : vector<8x512xf32>, i32 -> vector<8x512xf32>
    %197 = arith.andi %13, %19 : vector<8x512xi1>
    %198 = arith.andi %197, %21 : vector<8x512xi1>
    %cst_97 = arith.constant 0.000000e+00 : f32
    %199 = vector.broadcast %cst_97 : f32 to vector<8x512xf32>
    %200 = arith.select %198, %196, %199 : vector<8x512xi1>, vector<8x512xf32>
    %c48_98 = arith.constant 48 : index
    %c0_99 = arith.constant 0 : index
    %201 = vector.load %arg5[%c48_98, %c0_99] : memref<256x512xf32, #tpu.memory_space<vmem>>, vector<8x512xf32>
    tpu.vector_store %arg5[%c48_98, %c0_99], %200 {strides = array<i32>} : memref<256x512xf32, #tpu.memory_space<vmem>>, vector<8x512xf32>,
    %c56_i32_100 = arith.constant 56 : i32
    %202 = tpu.dynamic_rotate %164 by %c56_i32_100 dim 1 : vector<8x512xf32>, i32 -> vector<8x512xf32>
    %203 = arith.andi %13, %19 : vector<8x512xi1>
    %cst_101 = arith.constant 0.000000e+00 : f32
    %204 = vector.broadcast %cst_101 : f32 to vector<8x512xf32>
    %205 = arith.select %203, %202, %204 : vector<8x512xi1>, vector<8x512xf32>
    %c56_102 = arith.constant 56 : index
    %c0_103 = arith.constant 0 : index
    %206 = vector.load %arg5[%c56_102, %c0_103] : memref<256x512xf32, #tpu.memory_space<vmem>>, vector<8x512xf32>
    tpu.vector_store %arg5[%c56_102, %c0_103], %205 {strides = array<i32>} : memref<256x512xf32, #tpu.memory_space<vmem>>, vector<8x512xf32>,
    %c55_i32_104 = arith.constant 55 : i32
    %207 = tpu.dynamic_rotate %164 by %c55_i32_104 dim 1 : vector<8x512xf32>, i32 -> vector<8x512xf32>
    %208 = arith.andi %13, %19 : vector<8x512xi1>
    %209 = arith.andi %208, %23 : vector<8x512xi1>
    %cst_105 = arith.constant 0.000000e+00 : f32
    %210 = vector.broadcast %cst_105 : f32 to vector<8x512xf32>
    %211 = arith.select %209, %207, %210 : vector<8x512xi1>, vector<8x512xf32>
    %c64_106 = arith.constant 64 : index
    %c0_107 = arith.constant 0 : index
    %212 = vector.load %arg5[%c64_106, %c0_107] : memref<256x512xf32, #tpu.memory_space<vmem>>, vector<8x512xf32>
    tpu.vector_store %arg5[%c64_106, %c0_107], %211 {strides = array<i32>} : memref<256x512xf32, #tpu.memory_space<vmem>>, vector<8x512xf32>,
    %c9_i32_108 = arith.constant 9 : i32
    %213 = tpu.dynamic_rotate %164 by %c9_i32_108 dim 1 : vector<8x512xf32>, i32 -> vector<8x512xf32>
    %214 = arith.andi %17, %21 : vector<8x512xi1>
    %cst_109 = arith.constant 0.000000e+00 : f32
    %215 = vector.broadcast %cst_109 : f32 to vector<8x512xf32>
    %216 = arith.select %214, %213, %215 : vector<8x512xi1>, vector<8x512xf32>
    %c72_110 = arith.constant 72 : index
    %c0_111 = arith.constant 0 : index
    %217 = vector.load %arg5[%c72_110, %c0_111] : memref<256x512xf32, #tpu.memory_space<vmem>>, vector<8x512xf32>
    tpu.vector_store %arg5[%c72_110, %c0_111], %216 {strides = array<i32>} : memref<256x512xf32, #tpu.memory_space<vmem>>, vector<8x512xf32>,
    %c8_i32_112 = arith.constant 8 : i32
    %218 = tpu.dynamic_rotate %164 by %c8_i32_112 dim 1 : vector<8x512xf32>, i32 -> vector<8x512xf32>
    %cst_113 = arith.constant 0.000000e+00 : f32
    %219 = vector.broadcast %cst_113 : f32 to vector<8x512xf32>
    %220 = arith.select %17, %218, %219 : vector<8x512xi1>, vector<8x512xf32>
    %c80_114 = arith.constant 80 : index
    %c0_115 = arith.constant 0 : index
    %221 = vector.load %arg5[%c80_114, %c0_115] : memref<256x512xf32, #tpu.memory_space<vmem>>, vector<8x512xf32>
    tpu.vector_store %arg5[%c80_114, %c0_115], %220 {strides = array<i32>} : memref<256x512xf32, #tpu.memory_space<vmem>>, vector<8x512xf32>,
    %c7_i32_116 = arith.constant 7 : i32
    %222 = tpu.dynamic_rotate %164 by %c7_i32_116 dim 1 : vector<8x512xf32>, i32 -> vector<8x512xf32>
    %223 = arith.andi %17, %23 : vector<8x512xi1>
    %cst_117 = arith.constant 0.000000e+00 : f32
    %224 = vector.broadcast %cst_117 : f32 to vector<8x512xf32>
    %225 = arith.select %223, %222, %224 : vector<8x512xi1>, vector<8x512xf32>
    %c88_118 = arith.constant 88 : index
    %c0_119 = arith.constant 0 : index
    %226 = vector.load %arg5[%c88_118, %c0_119] : memref<256x512xf32, #tpu.memory_space<vmem>>, vector<8x512xf32>
    tpu.vector_store %arg5[%c88_118, %c0_119], %225 {strides = array<i32>} : memref<256x512xf32, #tpu.memory_space<vmem>>, vector<8x512xf32>,
    %c1_i32_120 = arith.constant 1 : i32
    %227 = tpu.dynamic_rotate %164 by %c1_i32_120 dim 1 : vector<8x512xf32>, i32 -> vector<8x512xf32>
    %cst_121 = arith.constant 0.000000e+00 : f32
    %228 = vector.broadcast %cst_121 : f32 to vector<8x512xf32>
    %229 = arith.select %21, %227, %228 : vector<8x512xi1>, vector<8x512xf32>
    %c96_122 = arith.constant 96 : index
    %c0_123 = arith.constant 0 : index
    %230 = vector.load %arg5[%c96_122, %c0_123] : memref<256x512xf32, #tpu.memory_space<vmem>>, vector<8x512xf32>
    tpu.vector_store %arg5[%c96_122, %c0_123], %229 {strides = array<i32>} : memref<256x512xf32, #tpu.memory_space<vmem>>, vector<8x512xf32>,
    %c104_124 = arith.constant 104 : index
    %c0_125 = arith.constant 0 : index
    %231 = vector.load %arg5[%c104_124, %c0_125] : memref<256x512xf32, #tpu.memory_space<vmem>>, vector<8x512xf32>
    tpu.vector_store %arg5[%c104_124, %c0_125], %164 {strides = array<i32>} : memref<256x512xf32, #tpu.memory_space<vmem>>, vector<8x512xf32>,
    %c511_i32_126 = arith.constant 511 : i32
    %232 = tpu.dynamic_rotate %164 by %c511_i32_126 dim 1 : vector<8x512xf32>, i32 -> vector<8x512xf32>
    %cst_127 = arith.constant 0.000000e+00 : f32
    %233 = vector.broadcast %cst_127 : f32 to vector<8x512xf32>
    %234 = arith.select %23, %232, %233 : vector<8x512xi1>, vector<8x512xf32>
    %c112_128 = arith.constant 112 : index
    %c0_129 = arith.constant 0 : index
    %235 = vector.load %arg5[%c112_128, %c0_129] : memref<256x512xf32, #tpu.memory_space<vmem>>, vector<8x512xf32>
    tpu.vector_store %arg5[%c112_128, %c0_129], %234 {strides = array<i32>} : memref<256x512xf32, #tpu.memory_space<vmem>>, vector<8x512xf32>,
    %c505_i32_130 = arith.constant 505 : i32
    %236 = tpu.dynamic_rotate %164 by %c505_i32_130 dim 1 : vector<8x512xf32>, i32 -> vector<8x512xf32>
    %237 = arith.andi %19, %21 : vector<8x512xi1>
    %cst_131 = arith.constant 0.000000e+00 : f32
    %238 = vector.broadcast %cst_131 : f32 to vector<8x512xf32>
    %239 = arith.select %237, %236, %238 : vector<8x512xi1>, vector<8x512xf32>
    %c120_132 = arith.constant 120 : index
    %c0_133 = arith.constant 0 : index
    %240 = vector.load %arg5[%c120_132, %c0_133] : memref<256x512xf32, #tpu.memory_space<vmem>>, vector<8x512xf32>
    tpu.vector_store %arg5[%c120_132, %c0_133], %239 {strides = array<i32>} : memref<256x512xf32, #tpu.memory_space<vmem>>, vector<8x512xf32>,
    %c504_i32_134 = arith.constant 504 : i32
    %241 = tpu.dynamic_rotate %164 by %c504_i32_134 dim 1 : vector<8x512xf32>, i32 -> vector<8x512xf32>
    %cst_135 = arith.constant 0.000000e+00 : f32
    %242 = vector.broadcast %cst_135 : f32 to vector<8x512xf32>
    %243 = arith.select %19, %241, %242 : vector<8x512xi1>, vector<8x512xf32>
    %c128_136 = arith.constant 128 : index
    %c0_137 = arith.constant 0 : index
    %244 = vector.load %arg5[%c128_136, %c0_137] : memref<256x512xf32, #tpu.memory_space<vmem>>, vector<8x512xf32>
    tpu.vector_store %arg5[%c128_136, %c0_137], %243 {strides = array<i32>} : memref<256x512xf32, #tpu.memory_space<vmem>>, vector<8x512xf32>,
    %c503_i32_138 = arith.constant 503 : i32
    %245 = tpu.dynamic_rotate %164 by %c503_i32_138 dim 1 : vector<8x512xf32>, i32 -> vector<8x512xf32>
    %246 = arith.andi %19, %23 : vector<8x512xi1>
    %cst_139 = arith.constant 0.000000e+00 : f32
    %247 = vector.broadcast %cst_139 : f32 to vector<8x512xf32>
    %248 = arith.select %246, %245, %247 : vector<8x512xi1>, vector<8x512xf32>
    %c136_140 = arith.constant 136 : index
    %c0_141 = arith.constant 0 : index
    %249 = vector.load %arg5[%c136_140, %c0_141] : memref<256x512xf32, #tpu.memory_space<vmem>>, vector<8x512xf32>
    tpu.vector_store %arg5[%c136_140, %c0_141], %248 {strides = array<i32>} : memref<256x512xf32, #tpu.memory_space<vmem>>, vector<8x512xf32>,
    %c457_i32_142 = arith.constant 457 : i32
    %250 = tpu.dynamic_rotate %164 by %c457_i32_142 dim 1 : vector<8x512xf32>, i32 -> vector<8x512xf32>
    %251 = arith.andi %15, %17 : vector<8x512xi1>
    %252 = arith.andi %251, %21 : vector<8x512xi1>
    %cst_143 = arith.constant 0.000000e+00 : f32
    %253 = vector.broadcast %cst_143 : f32 to vector<8x512xf32>
    %254 = arith.select %252, %250, %253 : vector<8x512xi1>, vector<8x512xf32>
    %c144_144 = arith.constant 144 : index
    %c0_145 = arith.constant 0 : index
    %255 = vector.load %arg5[%c144_144, %c0_145] : memref<256x512xf32, #tpu.memory_space<vmem>>, vector<8x512xf32>
    tpu.vector_store %arg5[%c144_144, %c0_145], %254 {strides = array<i32>} : memref<256x512xf32, #tpu.memory_space<vmem>>, vector<8x512xf32>,
    %c456_i32_146 = arith.constant 456 : i32
    %256 = tpu.dynamic_rotate %164 by %c456_i32_146 dim 1 : vector<8x512xf32>, i32 -> vector<8x512xf32>
    %257 = arith.andi %15, %17 : vector<8x512xi1>
    %cst_147 = arith.constant 0.000000e+00 : f32
    %258 = vector.broadcast %cst_147 : f32 to vector<8x512xf32>
    %259 = arith.select %257, %256, %258 : vector<8x512xi1>, vector<8x512xf32>
    %c152_148 = arith.constant 152 : index
    %c0_149 = arith.constant 0 : index
    %260 = vector.load %arg5[%c152_148, %c0_149] : memref<256x512xf32, #tpu.memory_space<vmem>>, vector<8x512xf32>
    tpu.vector_store %arg5[%c152_148, %c0_149], %259 {strides = array<i32>} : memref<256x512xf32, #tpu.memory_space<vmem>>, vector<8x512xf32>,
    %c455_i32_150 = arith.constant 455 : i32
    %261 = tpu.dynamic_rotate %164 by %c455_i32_150 dim 1 : vector<8x512xf32>, i32 -> vector<8x512xf32>
    %262 = arith.andi %15, %17 : vector<8x512xi1>
    %263 = arith.andi %262, %23 : vector<8x512xi1>
    %cst_151 = arith.constant 0.000000e+00 : f32
    %264 = vector.broadcast %cst_151 : f32 to vector<8x512xf32>
    %265 = arith.select %263, %261, %264 : vector<8x512xi1>, vector<8x512xf32>
    %c160_152 = arith.constant 160 : index
    %c0_153 = arith.constant 0 : index
    %266 = vector.load %arg5[%c160_152, %c0_153] : memref<256x512xf32, #tpu.memory_space<vmem>>, vector<8x512xf32>
    tpu.vector_store %arg5[%c160_152, %c0_153], %265 {strides = array<i32>} : memref<256x512xf32, #tpu.memory_space<vmem>>, vector<8x512xf32>,
    %c449_i32_154 = arith.constant 449 : i32
    %267 = tpu.dynamic_rotate %164 by %c449_i32_154 dim 1 : vector<8x512xf32>, i32 -> vector<8x512xf32>
    %268 = arith.andi %15, %21 : vector<8x512xi1>
    %cst_155 = arith.constant 0.000000e+00 : f32
    %269 = vector.broadcast %cst_155 : f32 to vector<8x512xf32>
    %270 = arith.select %268, %267, %269 : vector<8x512xi1>, vector<8x512xf32>
    %c168_156 = arith.constant 168 : index
    %c0_157 = arith.constant 0 : index
    %271 = vector.load %arg5[%c168_156, %c0_157] : memref<256x512xf32, #tpu.memory_space<vmem>>, vector<8x512xf32>
    tpu.vector_store %arg5[%c168_156, %c0_157], %270 {strides = array<i32>} : memref<256x512xf32, #tpu.memory_space<vmem>>, vector<8x512xf32>,
    %c448_i32_158 = arith.constant 448 : i32
    %272 = tpu.dynamic_rotate %164 by %c448_i32_158 dim 1 : vector<8x512xf32>, i32 -> vector<8x512xf32>
    %cst_159 = arith.constant 0.000000e+00 : f32
    %273 = vector.broadcast %cst_159 : f32 to vector<8x512xf32>
    %274 = arith.select %15, %272, %273 : vector<8x512xi1>, vector<8x512xf32>
    %c176_160 = arith.constant 176 : index
    %c0_161 = arith.constant 0 : index
    %275 = vector.load %arg5[%c176_160, %c0_161] : memref<256x512xf32, #tpu.memory_space<vmem>>, vector<8x512xf32>
    tpu.vector_store %arg5[%c176_160, %c0_161], %274 {strides = array<i32>} : memref<256x512xf32, #tpu.memory_space<vmem>>, vector<8x512xf32>,
    %c447_i32_162 = arith.constant 447 : i32
    %276 = tpu.dynamic_rotate %164 by %c447_i32_162 dim 1 : vector<8x512xf32>, i32 -> vector<8x512xf32>
    %277 = arith.andi %15, %23 : vector<8x512xi1>
    %cst_163 = arith.constant 0.000000e+00 : f32
    %278 = vector.broadcast %cst_163 : f32 to vector<8x512xf32>
    %279 = arith.select %277, %276, %278 : vector<8x512xi1>, vector<8x512xf32>
    %c184_164 = arith.constant 184 : index
    %c0_165 = arith.constant 0 : index
    %280 = vector.load %arg5[%c184_164, %c0_165] : memref<256x512xf32, #tpu.memory_space<vmem>>, vector<8x512xf32>
    tpu.vector_store %arg5[%c184_164, %c0_165], %279 {strides = array<i32>} : memref<256x512xf32, #tpu.memory_space<vmem>>, vector<8x512xf32>,
    %c441_i32_166 = arith.constant 441 : i32
    %281 = tpu.dynamic_rotate %164 by %c441_i32_166 dim 1 : vector<8x512xf32>, i32 -> vector<8x512xf32>
    %282 = arith.andi %15, %19 : vector<8x512xi1>
    %283 = arith.andi %282, %21 : vector<8x512xi1>
    %cst_167 = arith.constant 0.000000e+00 : f32
    %284 = vector.broadcast %cst_167 : f32 to vector<8x512xf32>
    %285 = arith.select %283, %281, %284 : vector<8x512xi1>, vector<8x512xf32>
    %c192_168 = arith.constant 192 : index
    %c0_169 = arith.constant 0 : index
    %286 = vector.load %arg5[%c192_168, %c0_169] : memref<256x512xf32, #tpu.memory_space<vmem>>, vector<8x512xf32>
    tpu.vector_store %arg5[%c192_168, %c0_169], %285 {strides = array<i32>} : memref<256x512xf32, #tpu.memory_space<vmem>>, vector<8x512xf32>,
    %c440_i32_170 = arith.constant 440 : i32
    %287 = tpu.dynamic_rotate %164 by %c440_i32_170 dim 1 : vector<8x512xf32>, i32 -> vector<8x512xf32>
    %288 = arith.andi %15, %19 : vector<8x512xi1>
    %cst_171 = arith.constant 0.000000e+00 : f32
    %289 = vector.broadcast %cst_171 : f32 to vector<8x512xf32>
    %290 = arith.select %288, %287, %289 : vector<8x512xi1>, vector<8x512xf32>
    %c200_172 = arith.constant 200 : index
    %c0_173 = arith.constant 0 : index
    %291 = vector.load %arg5[%c200_172, %c0_173] : memref<256x512xf32, #tpu.memory_space<vmem>>, vector<8x512xf32>
    tpu.vector_store %arg5[%c200_172, %c0_173], %290 {strides = array<i32>} : memref<256x512xf32, #tpu.memory_space<vmem>>, vector<8x512xf32>,
    %c439_i32_174 = arith.constant 439 : i32
    %292 = tpu.dynamic_rotate %164 by %c439_i32_174 dim 1 : vector<8x512xf32>, i32 -> vector<8x512xf32>
    %293 = arith.andi %15, %19 : vector<8x512xi1>
    %294 = arith.andi %293, %23 : vector<8x512xi1>
    %cst_175 = arith.constant 0.000000e+00 : f32
    %295 = vector.broadcast %cst_175 : f32 to vector<8x512xf32>
    %296 = arith.select %294, %292, %295 : vector<8x512xi1>, vector<8x512xf32>
    %c208_176 = arith.constant 208 : index
    %c0_177 = arith.constant 0 : index
    %297 = vector.load %arg5[%c208_176, %c0_177] : memref<256x512xf32, #tpu.memory_space<vmem>>, vector<8x512xf32>
    tpu.vector_store %arg5[%c208_176, %c0_177], %296 {strides = array<i32>} : memref<256x512xf32, #tpu.memory_space<vmem>>, vector<8x512xf32>,
    %c0_178 = arith.constant 0 : index
    %c0_179 = arith.constant 0 : index
    %298 = vector.load %arg5[%c0_178, %c0_179] : memref<256x512xf32, #tpu.memory_space<vmem>>, vector<256x512xf32>
    %299 = arith.truncf %298 : vector<256x512xf32> to vector<256x512xbf16>
    %c0_180 = arith.constant 0 : index
    %c0_181 = arith.constant 0 : index
    %300 = vector.load %arg3[%c0_180, %c0_181] : memref<8x256xbf16, #tpu.memory_space<vmem>>, vector<8x256xbf16>
    %cst_182 = arith.constant dense<0.000000e+00> : vector<8x512xf32>
    %301 = tpu.matmul %300, %299, %cst_182 {dimension_numbers = #tpu.dot_dimension_numbers<[1], [0], [0], [1], [0, 0, 1, 1], [], []>} : vector<8x256xbf16>, vector<256x512xbf16>, vector<8x512xf32> -> vector<8x512xf32>
    %cst_183 = arith.constant 0.000000e+00 : f32
    %302 = vector.broadcast %cst_183 : f32 to vector<8x512xf32>
    %303 = arith.maximumf %301, %302 : vector<8x512xf32>
    %c0_184 = arith.constant 0 : index
    %c0_185 = arith.constant 0 : index
    %c0_186 = arith.constant 0 : index
    %304 = vector.load %arg4[%c0_184, %c0_185, %c0_186] : memref<1x8x512xf32, #tpu.memory_space<vmem>>, vector<1x8x512xf32>
    %305 = vector.shape_cast %304 : vector<1x8x512xf32> to vector<8x512xf32>
    %306 = vector.shape_cast %303 : vector<8x512xf32> to vector<1x8x512xf32>
    tpu.vector_store %arg4[%c0_184, %c0_185, %c0_186], %306 {strides = array<i32>} : memref<1x8x512xf32, #tpu.memory_space<vmem>>, vector<1x8x512xf32>,
    return
  }
  func.func @transform_0(%arg0: i32) -> (i32, i32, i32) {
    %c0_i32 = arith.constant 0 : i32
    %c0_i32_0 = arith.constant 0 : i32
    %c0_i32_1 = arith.constant 0 : i32
    return %arg0, %c0_i32, %c0_i32_0 : i32, i32, i32
  }
  func.func @transform_1(%arg0: i32) -> (i32, i32) {
    %c0_i32 = arith.constant 0 : i32
    %c0_i32_0 = arith.constant 0 : i32
    %c0_i32_1 = arith.constant 0 : i32
    return %c0_i32, %c0_i32_0 : i32, i32
  }
  func.func @transform_2(%arg0: i32) -> (i32, i32) {
    %c0_i32 = arith.constant 0 : i32
    %c0_i32_0 = arith.constant 0 : i32
    %c0_i32_1 = arith.constant 0 : i32
    return %c0_i32, %c0_i32_0 : i32, i32
  }
  func.func @transform_3(%arg0: i32) -> (i32, i32, i32) {
    %c0_i32 = arith.constant 0 : i32
    %c0_i32_0 = arith.constant 0 : i32
    %c0_i32_1 = arith.constant 0 : i32
    return %arg0, %c0_i32, %c0_i32_0 : i32, i32, i32
  }
}

</mosaic_0001>

<llo_original>
// kernel: up_block_forward.1
$region0: #{up_block_forward.1}
  #allocation0 [shape = 'u32[]', space=smem, size = 0x4, offset = 0x4, fixed_abs, tag = 'smem constant byte address 0x4 - core index']
  #allocation1 [shape = 'u32[144,128]{1,0:T(1,128)}', space=vmem, size = 0x12000, scoped, tag = 'internal scratch']
  #allocation2 [shape = 'f32[256,512]{1,0:T(8,128)}', space=vmem, size = 0x80000, scoped, tag = 'scratch operand']
  %s0 = inlined_call_operand.vmem [shape: f32[2,8,512], index: 0, kind: input, shape index: {}]
  %s1 = inlined_call_operand.vmem [shape: bf16[8,256], index: 1, kind: input, shape index: {}]
  %s2 = inlined_call_operand.vmem [shape: bf16[8,256], index: 2, kind: input, shape index: {}]
  %s3 = inlined_call_operand.vmem [shape: f32[2,8,512], index: 3, kind: output, shape index: {}]
  %s4 = sld [smem:[#allocation0]]
  $region45: #{up_block_forward.1} parent=0
    _
  %s6 = ssub.s32 1, %s4
  %s7 = scalar_select 0, %s6, %s4
  loop: start=0, step=1, limit=4
  $region2: #{up_block_forward.1} parent=0 // loop_pre_header
    _
  $region3: #{up_block_forward.1} parent=0 // loop_header
    %s9 = sphi 0, %s13
    %p10 = scmp.ge.s32.totalorder %s9, 4
    %s19 = sphi 0, %s21
    %s22 = sphi 0, %s19
    %s23 = sphi 0, %s22
    %s39 = sphi 0, %s23
    %s43 = sphi 0, %s43
    %s45 = sphi 0, %s43
    %s46 = sphi 0, %s45
    %s60 = sphi 0, %s46
    %s64 = sphi 0, %s64
    %s66 = sphi 0, %s64
    %s67 = sphi 0, %s66
    %s81 = sphi 0, %s67
    %s87 = sphi 0, %s89
    %s90 = sphi 0, %s87
    %s91 = sphi 0, %s90
    %s107 = sphi 0, %s91
  $region4: #{up_block_forward.1} parent=0 // loop_header_branch
    %12 = sbr.rel (%p10) target = $region8
  $region5: #{up_block_forward.1} parent=0 // loop_body
    %s14 = ssub.s32 %s9, 1
    %s15 = ssub.s32 %s9, 2
    %s16 = sadd.s32 %s9, 1
    %s17 = ssub.s32 %s9, %s16
    %p18 = scmp.eq.s32.totalorder %s17, 0
    %s20 = sadd.s32 %s19, 1
    %s21 = scalar_select %p18, %s19, %s20
    %p24 = pneg %p18
    %p25 = scmp.eq.s32.totalorder %s9, 1
    %p26 = por %p24, %p25
    %p27 = scmp.ne.s32.totalorder %s19, %s22
    %p28 = scmp.eq.s32.totalorder %s9, 0
    %p29 = por %p27, %p28
    %p30 = scmp.ne.s32.totalorder %s19, %s22
    %p31 = scmp.eq.s32.totalorder %s14, 1
    %p32 = por %p30, %p31
    %p33 = scmp.ne.s32.totalorder %s22, %s23
    %p34 = scmp.eq.s32.totalorder %s14, 0
    %p35 = por %p33, %p34
    %p36 = scmp.ne.s32.totalorder %s22, %s23
    %p37 = scmp.eq.s32.totalorder %s15, 1
    %p38 = por %p36, %p37
    %p40 = scmp.ne.s32.totalorder %s23, %s39
    %p41 = scmp.eq.s32.totalorder %s15, 0
    %p42 = por %p40, %p41
    %s44 = sadd.s32 %s43, 1
    %p47 = scmp.eq.s32.totalorder %s9, 1
    %p48 = scmp.ne.s32.totalorder %s43, %s45
    %p49 = scmp.eq.s32.totalorder %s9, 0
    %p50 = por %p48, %p49
    %p51 = scmp.ne.s32.totalorder %s43, %s45
    %p52 = scmp.eq.s32.totalorder %s14, 1
    %p53 = por %p51, %p52
    %p54 = scmp.ne.s32.totalorder %s45, %s46
    %p55 = scmp.eq.s32.totalorder %s14, 0
    %p56 = por %p54, %p55
    %p57 = scmp.ne.s32.totalorder %s45, %s46
    %p58 = scmp.eq.s32.totalorder %s15, 1
    %p59 = por %p57, %p58
    %p61 = scmp.ne.s32.totalorder %s46, %s60
    %p62 = scmp.eq.s32.totalorder %s15, 0
    %p63 = por %p61, %p62
    %s65 = sadd.s32 %s64, 1
    %p68 = scmp.eq.s32.totalorder %s9, 1
    %p69 = scmp.ne.s32.totalorder %s64, %s66
    %p70 = scmp.eq.s32.totalorder %s9, 0
    %p71 = por %p69, %p70
    %p72 = scmp.ne.s32.totalorder %s64, %s66
    %p73 = scmp.eq.s32.totalorder %s14, 1
    %p74 = por %p72, %p73
    %p75 = scmp.ne.s32.totalorder %s66, %s67
    %p76 = scmp.eq.s32.totalorder %s14, 0
    %p77 = por %p75, %p76
    %p78 = scmp.ne.s32.totalorder %s66, %s67
    %p79 = scmp.eq.s32.totalorder %s15, 1
    %p80 = por %p78, %p79
    %p82 = scmp.ne.s32.totalorder %s67, %s81
    %p83 = scmp.eq.s32.totalorder %s15, 0
    %p84 = por %p82, %p83
    %s85 = ssub.s32 %s9, %s16
    %p86 = scmp.eq.s32.totalorder %s85, 0
    %s88 = sadd.s32 %s87, 1
    %s89 = scalar_select %p86, %s87, %s88
    %p92 = pneg %p86
    %p93 = scmp.eq.s32.totalorder %s9, 1
    %p94 = por %p92, %p93
    %p95 = scmp.ne.s32.totalorder %s87, %s90
    %p96 = scmp.eq.s32.totalorder %s9, 0
    %p97 = por %p95, %p96
    %p98 = scmp.ne.s32.totalorder %s87, %s90
    %p99 = scmp.eq.s32.totalorder %s14, 1
    %p100 = por %p98, %p99
    %p101 = scmp.ne.s32.totalorder %s90, %s91
    %p102 = scmp.eq.s32.totalorder %s14, 0
    %p103 = por %p101, %p102
    %p104 = scmp.ne.s32.totalorder %s90, %s91
    %p105 = scmp.eq.s32.totalorder %s15, 1
    %p106 = por %p104, %p105
    %p108 = scmp.ne.s32.totalorder %s91, %s107
    %p109 = scmp.eq.s32.totalorder %s15, 0
    %p110 = por %p108, %p109
    %p111 = scmp.le.s32.totalorder 1, %s9
    %p112 = scmp.lt.s32.totalorder %s9, 3
    %p113 = pnand %p111, %p112
    %p114 = pneg %p113
    // Predicated region
    $region9: #{up_block_forward.1} parent=5 // pred_check
      _
    $region10: #{up_block_forward.1} parent=5 // pred_check_branch
      %116 = sbr.rel (%p113) target = $region12
    $region11: #{up_block_forward.1} parent=5 // pred_region
      %s117 = ssub.s32 %s9, 1
      // Predicated region
      $region13: #{up_block_forward.1} parent=11 // pred_check
        %p118 = pneg %p56
      $region14: #{up_block_forward.1} parent=11 // pred_check_branch
        %120 = sbr.rel (%p118) target = $region16
      $region15: #{up_block_forward.1} parent=11 // pred_region
        _
      $region16: #{up_block_forward.1} parent=11 // pred_fallthru
        _
      // Predicated region
      $region17: #{up_block_forward.1} parent=11 // pred_check
        %p121 = pneg %p77
      $region18: #{up_block_forward.1} parent=11 // pred_check_branch
        %123 = sbr.rel (%p121) target = $region20
      $region19: #{up_block_forward.1} parent=11 // pred_region
        _
      $region20: #{up_block_forward.1} parent=11 // pred_fallthru
        _
    $region12: #{up_block_forward.1} parent=5 // pred_fallthru
      _
    %p124 = scmp.lt.s32.totalorder %s9, 2
    // Predicated region
    $region21: #{up_block_forward.1} parent=5 // pred_check
      %p125 = pneg %p124
    $region22: #{up_block_forward.1} parent=5 // pred_check_branch
      %127 = sbr.rel (%p125) target = $region24
    $region23: #{up_block_forward.1} parent=5 // pred_region
      // Predicated region
      $region25: #{up_block_forward.1} parent=23 // pred_check
        %p128 = pneg %p29
      $region26: #{up_block_forward.1} parent=23 // pred_check_branch
        %130 = sbr.rel (%p128) target = $region28
      $region27: #{up_block_forward.1} parent=23 // pred_region
        %p131 = scmp.lt.s32.totalorder %s9, 1
        %s132 = scalar_select %p131, %s9, 1
        %s133 = smul.addr %s132, 4
        %s134 = smul.addr %s133, 8
        %s135 = scalar_lea.vmem %s0, %s134
      $region28: #{up_block_forward.1} parent=23 // pred_fallthru
        _
    $region24: #{up_block_forward.1} parent=5 // pred_fallthru
      _
    %p136 = scmp.le.s32.totalorder 1, %s9
    %p137 = scmp.lt.s32.totalorder %s9, 3
    %p138 = pnand %p136, %p137
    %p139 = pneg %p138
    // Predicated region
    $region29: #{up_block_forward.1} parent=5 // pred_check
      _
    $region30: #{up_block_forward.1} parent=5 // pred_check_branch
      %141 = sbr.rel (%p138) target = $region32
    $region31: #{up_block_forward.1} parent=5 // pred_region
      %s142 = ssub.s32 %s9, 1
      %p143 = scmp.lt.s32.totalorder %s14, 1
      %s144 = scalar_select %p143, %s14, 1
      %s145 = smul.addr %s144, 4
      %s146 = smul.addr %s145, 8
      %s147 = scalar_lea.vmem %s0, %s146
      %p148 = pneg %p35
      %p149 = pneg %p32
      %p150 = pneg %p56
      %p151 = pneg %p53
      %p152 = pneg %p77
      %p153 = pneg %p74
      %p154 = pneg %p103
      %p155 = pneg %p100
      %p156 = scmp.lt.s32.totalorder %s14, 1
      %s157 = scalar_select %p156, %s14, 1
      %s158 = smul.addr %s157, 4
      %s159 = smul.addr %s158, 8
      %s160 = scalar_lea.vmem %s3, %s159
      %p161 = scmp.lt.s32.totalorder %s14, 1
      %s162 = scalar_select %p161, %s14, 1
      %s163 = smul.addr %s162, 4
      %s164 = smul.addr %s163, 8
      %s165 = scalar_lea.vmem %s0, %s164
      %p166 = scmp.lt.s32.totalorder %s14, 1
      %s167 = scalar_select %p166, %s14, 1
      %s168 = smul.addr %s167, 4
      %s169 = smul.addr %s168, 8
      %s170 = scalar_lea.vmem %s3, %s169
      %v171 = vlaneseq
      %v172 = vshrl.u32 %v171, 7
      %v173 = vadd.s32 %v172, 8
      %v174 = vadd.s32 %v172, 16
      %v175 = vadd.s32 %v172, 24
      %v176 = vadd.s32 %v172, 32
      %vm177 = vcmp.eq.s32.totalorder %v172, 0
      %vm178 = vcmp.eq.s32.totalorder %v173, 0
      %vm179 = vcmp.eq.s32.totalorder %v174, 0
      %vm180 = vcmp.eq.s32.totalorder %v175, 0
      %vm181 = vcmp.eq.s32.totalorder %v176, 0
      %v182 = vsel %vm177, 1.0, 0.0
      %v183 = vsel %vm178, 1.0, 0.0
      %v184 = vsel %vm179, 1.0, 0.0
      %v185 = vsel %vm180, 1.0, 0.0
      %v186 = vsel %vm181, 1.0, 0.0
      %187 = vst [vmem:[#allocation2 + $0x360] sm:$0xff] %v182
      %188 = vst [vmem:[#allocation2 + $0x368] sm:$0xff] %v182
      %189 = vst [vmem:[#allocation2 + $0x370] sm:$0xff] %v182
      %190 = vst [vmem:[#allocation2 + $0x378] sm:$0xff] %v182
      %191 = vst [vmem:[#allocation2 + $0x380] sm:$0xff] %v183
      %192 = vst [vmem:[#allocation2 + $0x388] sm:$0xff] %v183
      %193 = vst [vmem:[#allocation2 + $0x390] sm:$0xff] %v183
      %194 = vst [vmem:[#allocation2 + $0x398] sm:$0xff] %v183
      %195 = vst [vmem:[#allocation2 + $0x3a0] sm:$0xff] %v184
      %196 = vst [vmem:[#allocation2 + $0x3a8] sm:$0xff] %v184
      %197 = vst [vmem:[#allocation2 + $0x3b0] sm:$0xff] %v184
      %198 = vst [vmem:[#allocation2 + $0x3b8] sm:$0xff] %v184
      %199 = vst [vmem:[#allocation2 + $0x3c0] sm:$0xff] %v185
      %200 = vst [vmem:[#allocation2 + $0x3c8] sm:$0xff] %v185
      %201 = vst [vmem:[#allocation2 + $0x3d0] sm:$0xff] %v185
      %202 = vst [vmem:[#allocation2 + $0x3d8] sm:$0xff] %v185
      %203 = vst [vmem:[#allocation2 + $0x3e0] sm:$0xff] %v186
      %204 = vst [vmem:[#allocation2 + $0x3e8] sm:$0xff] %v186
      %205 = vst [vmem:[#allocation2 + $0x3f0] sm:$0xff] %v186
      %206 = vst [vmem:[#allocation2 + $0x3f8] sm:$0xff] %v186
      %v207 = vlaneseq
      %v208 = vand.u32 %v207, 127
      %v209 = vadd.s32 %v208, 128
      %v210 = vadd.s32 %v208, 256
      %v211 = vadd.s32 %v208, 384
      %v212 = vand.u32 %v208, 63
      %v213 = vand.u32 %v209, 63
      %v214 = vand.u32 %v210, 63
      %v215 = vand.u32 %v211, 63
      %v216 = vand.u32 %v208, 7
      %v217 = vand.u32 %v209, 7
      %v218 = vand.u32 %v210, 7
      %v219 = vand.u32 %v211, 7
      %vm220 = vcmp.ge.s32.totalorder %v208, 64
      %vm221 = vcmp.ge.s32.totalorder %v209, 64
      %vm222 = vcmp.ge.s32.totalorder %v210, 64
      %vm223 = vcmp.ge.s32.totalorder %v211, 64
      %vm224 = vcmp.lt.s32.totalorder %v208, 448
      %vm225 = vcmp.lt.s32.totalorder %v209, 448
      %vm226 = vcmp.lt.s32.totalorder %v210, 448
      %vm227 = vcmp.lt.s32.totalorder %v211, 448
      %vm228 = vcmp.ge.s32.totalorder %v212, 8
      %vm229 = vcmp.ge.s32.totalorder %v213, 8
      %vm230 = vcmp.ge.s32.totalorder %v214, 8
      %vm231 = vcmp.ge.s32.totalorder %v215, 8
      %vm232 = vcmp.lt.s32.totalorder %v212, 56
      %vm233 = vcmp.lt.s32.totalorder %v213, 56
      %vm234 = vcmp.lt.s32.totalorder %v214, 56
      %vm235 = vcmp.lt.s32.totalorder %v215, 56
      %vm236 = vcmp.ge.s32.totalorder %v216, 1
      %vm237 = vcmp.ge.s32.totalorder %v217, 1
      %vm238 = vcmp.ge.s32.totalorder %v218, 1
      %vm239 = vcmp.ge.s32.totalorder %v219, 1
      %vm240 = vcmp.lt.s32.totalorder %v216, 7
      %vm241 = vcmp.lt.s32.totalorder %v217, 7
      %vm242 = vcmp.lt.s32.totalorder %v218, 7
      %vm243 = vcmp.lt.s32.totalorder %v219, 7
      %v244 = vld [vmem:[%s165] sm:$0xff]
      %v245 = vld [vmem:[%s165 + $0x8] sm:$0xff]
      %v246 = vld [vmem:[%s165 + $0x10] sm:$0xff]
      %v247 = vld [vmem:[%s165 + $0x18] sm:$0xff]
      %248 = vrot.lane.b32.xlu0 %v244, 73
      %v249 = vpop.permute.xlu0 %248
      %250 = vrot.lane.b32.xlu0 %v245, 73
      %v251 = vpop.permute.xlu0 %250
      %252 = vrot.lane.b32.xlu0 %v246, 73
      %v253 = vpop.permute.xlu0 %252
      %254 = vrot.lane.b32.xlu0 %v247, 73
      %v255 = vpop.permute.xlu0 %254
      %vm256 = vcmp.lt.s32.totalorder %v208, 73
      %v257 = vsel %vm256, %v253, %v255
      %v258 = vsel %vm256, %v251, %v253
      %v259 = vsel %vm256, %v249, %v251
      %v260 = vsel %vm256, %v255, %v249
      %vm261 = vmand %vm220, %vm228
      %vm262 = vmand %vm221, %vm229
      %vm263 = vmand %vm222, %vm230
      %vm264 = vmand %vm223, %vm231
      %vm265 = vmand %vm261, %vm236
      %vm266 = vmand %vm262, %vm237
      %vm267 = vmand %vm263, %vm238
      %vm268 = vmand %vm264, %vm239
      %v269 = vsel %vm265, %v260, 0.0
      %v270 = vsel %vm266, %v259, 0.0
      %v271 = vsel %vm267, %v258, 0.0
      %v272 = vsel %vm268, %v257, 0.0
      %273 = vst [vmem:[#allocation2] sm:$0xff] %v269
      %274 = vst [vmem:[#allocation2 + $0x8] sm:$0xff] %v270
      %275 = vst [vmem:[#allocation2 + $0x10] sm:$0xff] %v271
      %276 = vst [vmem:[#allocation2 + $0x18] sm:$0xff] %v272
      %277 = vrot.lane.b32.xlu0 %v244, 72
      %v278 = vpop.permute.xlu0 %277
      %279 = vrot.lane.b32.xlu0 %v245, 72
      %v280 = vpop.permute.xlu0 %279
      %281 = vrot.lane.b32.xlu0 %v246, 72
      %v282 = vpop.permute.xlu0 %281
      %283 = vrot.lane.b32.xlu0 %v247, 72
      %v284 = vpop.permute.xlu0 %283
      %vm285 = vcmp.lt.s32.totalorder %v208, 72
      %v286 = vsel %vm285, %v282, %v284
      %v287 = vsel %vm285, %v280, %v282
      %v288 = vsel %vm285, %v278, %v280
      %v289 = vsel %vm285, %v284, %v278
      %v290 = vsel %vm261, %v289, 0.0
      %v291 = vsel %vm262, %v288, 0.0
      %v292 = vsel %vm263, %v287, 0.0
      %v293 = vsel %vm264, %v286, 0.0
      %294 = vst [vmem:[#allocation2 + $0x20] sm:$0xff] %v290
      %295 = vst [vmem:[#allocation2 + $0x28] sm:$0xff] %v291
      %296 = vst [vmem:[#allocation2 + $0x30] sm:$0xff] %v292
      %297 = vst [vmem:[#allocation2 + $0x38] sm:$0xff] %v293
      %298 = vrot.lane.b32.xlu0 %v244, 71
      %v299 = vpop.permute.xlu0 %298
      %300 = vrot.lane.b32.xlu0 %v245, 71
      %v301 = vpop.permute.xlu0 %300
      %302 = vrot.lane.b32.xlu0 %v246, 71
      %v303 = vpop.permute.xlu0 %302
      %304 = vrot.lane.b32.xlu0 %v247, 71
      %v305 = vpop.permute.xlu0 %304
      %vm306 = vcmp.lt.s32.totalorder %v208, 71
      %v307 = vsel %vm306, %v303, %v305
      %v308 = vsel %vm306, %v301, %v303
      %v309 = vsel %vm306, %v299, %v301
      %v310 = vsel %vm306, %v305, %v299
      %vm311 = vmand %vm261, %vm240
      %vm312 = vmand %vm262, %vm241
      %vm313 = vmand %vm263, %vm242
      %vm314 = vmand %vm264, %vm243
      %v315 = vsel %vm311, %v310, 0.0
      %v316 = vsel %vm312, %v309, 0.0
      %v317 = vsel %vm313, %v308, 0.0
      %v318 = vsel %vm314, %v307, 0.0
      %319 = vst [vmem:[#allocation2 + $0x40] sm:$0xff] %v315
      %320 = vst [vmem:[#allocation2 + $0x48] sm:$0xff] %v316
      %321 = vst [vmem:[#allocation2 + $0x50] sm:$0xff] %v317
      %322 = vst [vmem:[#allocation2 + $0x58] sm:$0xff] %v318
      %323 = vrot.lane.b32.xlu0 %v244, 65
      %v324 = vpop.permute.xlu0 %323
      %325 = vrot.lane.b32.xlu0 %v245, 65
      %v326 = vpop.permute.xlu0 %325
      %327 = vrot.lane.b32.xlu0 %v246, 65
      %v328 = vpop.permute.xlu0 %327
      %329 = vrot.lane.b32.xlu0 %v247, 65
      %v330 = vpop.permute.xlu0 %329
      %vm331 = vcmp.lt.s32.totalorder %v208, 65
      %v332 = vsel %vm331, %v328, %v330
      %v333 = vsel %vm331, %v326, %v328
      %v334 = vsel %vm331, %v324, %v326
      %v335 = vsel %vm331, %v330, %v324
      %vm336 = vmand %vm220, %vm236
      %vm337 = vmand %vm221, %vm237
      %vm338 = vmand %vm222, %vm238
      %vm339 = vmand %vm223, %vm239
      %v340 = vsel %vm336, %v335, 0.0
      %v341 = vsel %vm337, %v334, 0.0
      %v342 = vsel %vm338, %v333, 0.0
      %v343 = vsel %vm339, %v332, 0.0
      %344 = vst [vmem:[#allocation2 + $0x60] sm:$0xff] %v340
      %345 = vst [vmem:[#allocation2 + $0x68] sm:$0xff] %v341
      %346 = vst [vmem:[#allocation2 + $0x70] sm:$0xff] %v342
      %347 = vst [vmem:[#allocation2 + $0x78] sm:$0xff] %v343
      %348 = vrot.lane.b32.xlu0 %v244, 64
      %v349 = vpop.permute.xlu0 %348
      %350 = vrot.lane.b32.xlu0 %v245, 64
      %v351 = vpop.permute.xlu0 %350
      %352 = vrot.lane.b32.xlu0 %v246, 64
      %v353 = vpop.permute.xlu0 %352
      %354 = vrot.lane.b32.xlu0 %v247, 64
      %v355 = vpop.permute.xlu0 %354
      %vm356 = vcmp.lt.s32.totalorder %v208, 64
      %v357 = vsel %vm356, %v353, %v355
      %v358 = vsel %vm356, %v351, %v353
      %v359 = vsel %vm356, %v349, %v351
      %v360 = vsel %vm356, %v355, %v349
      %v361 = vsel %vm220, %v360, 0.0
      %v362 = vsel %vm221, %v359, 0.0
      %v363 = vsel %vm222, %v358, 0.0
      %v364 = vsel %vm223, %v357, 0.0
      %365 = vst [vmem:[#allocation2 + $0x80] sm:$0xff] %v361
      %366 = vst [vmem:[#allocation2 + $0x88] sm:$0xff] %v362
      %367 = vst [vmem:[#allocation2 + $0x90] sm:$0xff] %v363
      %368 = vst [vmem:[#allocation2 + $0x98] sm:$0xff] %v364
      %369 = vrot.lane.b32.xlu0 %v244, 63
      %v370 = vpop.permute.xlu0 %369
      %371 = vrot.lane.b32.xlu0 %v245, 63
      %v372 = vpop.permute.xlu0 %371
      %373 = vrot.lane.b32.xlu0 %v246, 63
      %v374 = vpop.permute.xlu0 %373
      %375 = vrot.lane.b32.xlu0 %v247, 63
      %v376 = vpop.permute.xlu0 %375
      %vm377 = vcmp.lt.s32.totalorder %v208, 63
      %v378 = vsel %vm377, %v374, %v376
      %v379 = vsel %vm377, %v372, %v374
      %v380 = vsel %vm377, %v370, %v372
      %v381 = vsel %vm377, %v376, %v370
      %vm382 = vmand %vm220, %vm240
      %vm383 = vmand %vm221, %vm241
      %vm384 = vmand %vm222, %vm242
      %vm385 = vmand %vm223, %vm243
      %v386 = vsel %vm382, %v381, 0.0
      %v387 = vsel %vm383, %v380, 0.0
      %v388 = vsel %vm384, %v379, 0.0
      %v389 = vsel %vm385, %v378, 0.0
      %390 = vst [vmem:[#allocation2 + $0xa0] sm:$0xff] %v386
      %391 = vst [vmem:[#allocation2 + $0xa8] sm:$0xff] %v387
      %392 = vst [vmem:[#allocation2 + $0xb0] sm:$0xff] %v388
      %393 = vst [vmem:[#allocation2 + $0xb8] sm:$0xff] %v389
      %394 = vrot.lane.b32.xlu0 %v244, 57
      %v395 = vpop.permute.xlu0 %394
      %396 = vrot.lane.b32.xlu0 %v245, 57
      %v397 = vpop.permute.xlu0 %396
      %398 = vrot.lane.b32.xlu0 %v246, 57
      %v399 = vpop.permute.xlu0 %398
      %400 = vrot.lane.b32.xlu0 %v247, 57
      %v401 = vpop.permute.xlu0 %400
      %vm402 = vcmp.lt.s32.totalorder %v208, 57
      %v403 = vsel %vm402, %v399, %v401
      %v404 = vsel %vm402, %v397, %v399
      %v405 = vsel %vm402, %v395, %v397
      %v406 = vsel %vm402, %v401, %v395
      %vm407 = vmand %vm220, %vm232
      %vm408 = vmand %vm221, %vm233
      %vm409 = vmand %vm222, %vm234
      %vm410 = vmand %vm223, %vm235
      %vm411 = vmand %vm407, %vm236
      %vm412 = vmand %vm408, %vm237
      %vm413 = vmand %vm409, %vm238
      %vm414 = vmand %vm410, %vm239
      %v415 = vsel %vm411, %v406, 0.0
      %v416 = vsel %vm412, %v405, 0.0
      %v417 = vsel %vm413, %v404, 0.0
      %v418 = vsel %vm414, %v403, 0.0
      %419 = vst [vmem:[#allocation2 + $0xc0] sm:$0xff] %v415
      %420 = vst [vmem:[#allocation2 + $0xc8] sm:$0xff] %v416
      %421 = vst [vmem:[#allocation2 + $0xd0] sm:$0xff] %v417
      %422 = vst [vmem:[#allocation2 + $0xd8] sm:$0xff] %v418
      %423 = vrot.lane.b32.xlu0 %v244, 56
      %v424 = vpop.permute.xlu0 %423
      %425 = vrot.lane.b32.xlu0 %v245, 56
      %v426 = vpop.permute.xlu0 %425
      %427 = vrot.lane.b32.xlu0 %v246, 56
      %v428 = vpop.permute.xlu0 %427
      %429 = vrot.lane.b32.xlu0 %v247, 56
      %v430 = vpop.permute.xlu0 %429
      %vm431 = vcmp.lt.s32.totalorder %v208, 56
      %v432 = vsel %vm431, %v428, %v430
      %v433 = vsel %vm431, %v426, %v428
      %v434 = vsel %vm431, %v424, %v426
      %v435 = vsel %vm431, %v430, %v424
      %v436 = vsel %vm407, %v435, 0.0
      %v437 = vsel %vm408, %v434, 0.0
      %v438 = vsel %vm409, %v433, 0.0
      %v439 = vsel %vm410, %v432, 0.0
      %440 = vst [vmem:[#allocation2 + $0xe0] sm:$0xff] %v436
      %441 = vst [vmem:[#allocation2 + $0xe8] sm:$0xff] %v437
      %442 = vst [vmem:[#allocation2 + $0xf0] sm:$0xff] %v438
      %443 = vst [vmem:[#allocation2 + $0xf8] sm:$0xff] %v439
      %444 = vrot.lane.b32.xlu0 %v244, 55
      %v445 = vpop.permute.xlu0 %444
      %446 = vrot.lane.b32.xlu0 %v245, 55
      %v447 = vpop.permute.xlu0 %446
      %448 = vrot.lane.b32.xlu0 %v246, 55
      %v449 = vpop.permute.xlu0 %448
      %450 = vrot.lane.b32.xlu0 %v247, 55
      %v451 = vpop.permute.xlu0 %450
      %vm452 = vcmp.lt.s32.totalorder %v208, 55
      %v453 = vsel %vm452, %v449, %v451
      %v454 = vsel %vm452, %v447, %v449
      %v455 = vsel %vm452, %v445, %v447
      %v456 = vsel %vm452, %v451, %v445
      %vm457 = vmand %vm407, %vm240
      %vm458 = vmand %vm408, %vm241
      %vm459 = vmand %vm409, %vm242
      %vm460 = vmand %vm410, %vm243
      %v461 = vsel %vm457, %v456, 0.0
      %v462 = vsel %vm458, %v455, 0.0
      %v463 = vsel %vm459, %v454, 0.0
      %v464 = vsel %vm460, %v453, 0.0
      %465 = vst [vmem:[#allocation2 + $0x100] sm:$0xff] %v461
      %466 = vst [vmem:[#allocation2 + $0x108] sm:$0xff] %v462
      %467 = vst [vmem:[#allocation2 + $0x110] sm:$0xff] %v463
      %468 = vst [vmem:[#allocation2 + $0x118] sm:$0xff] %v464
      %469 = vrot.lane.b32.xlu0 %v244, 9
      %v470 = vpop.permute.xlu0 %469
      %471 = vrot.lane.b32.xlu0 %v245, 9
      %v472 = vpop.permute.xlu0 %471
      %473 = vrot.lane.b32.xlu0 %v246, 9
      %v474 = vpop.permute.xlu0 %473
      %475 = vrot.lane.b32.xlu0 %v247, 9
      %v476 = vpop.permute.xlu0 %475
      %vm477 = vcmp.lt.s32.totalorder %v208, 9
      %v478 = vsel %vm477, %v474, %v476
      %v479 = vsel %vm477, %v472, %v474
      %v480 = vsel %vm477, %v470, %v472
      %v481 = vsel %vm477, %v476, %v470
      %vm482 = vmand %vm228, %vm236
      %vm483 = vmand %vm229, %vm237
      %vm484 = vmand %vm230, %vm238
      %vm485 = vmand %vm231, %vm239
      %v486 = vsel %vm482, %v481, 0.0
      %v487 = vsel %vm483, %v480, 0.0
      %v488 = vsel %vm484, %v479, 0.0
      %v489 = vsel %vm485, %v478, 0.0
      %490 = vst [vmem:[#allocation2 + $0x120] sm:$0xff] %v486
      %491 = vst [vmem:[#allocation2 + $0x128] sm:$0xff] %v487
      %492 = vst [vmem:[#allocation2 + $0x130] sm:$0xff] %v488
      %493 = vst [vmem:[#allocation2 + $0x138] sm:$0xff] %v489
      %494 = vrot.lane.b32.xlu0 %v244, 8
      %v495 = vpop.permute.xlu0 %494
      %496 = vrot.lane.b32.xlu0 %v245, 8
      %v497 = vpop.permute.xlu0 %496
      %498 = vrot.lane.b32.xlu0 %v246, 8
      %v499 = vpop.permute.xlu0 %498
      %500 = vrot.lane.b32.xlu0 %v247, 8
      %v501 = vpop.permute.xlu0 %500
      %vm502 = vcmp.lt.s32.totalorder %v208, 8
      %v503 = vsel %vm502, %v499, %v501
      %v504 = vsel %vm502, %v497, %v499
      %v505 = vsel %vm502, %v495, %v497
      %v506 = vsel %vm502, %v501, %v495
      %v507 = vsel %vm228, %v506, 0.0
      %v508 = vsel %vm229, %v505, 0.0
      %v509 = vsel %vm230, %v504, 0.0
      %v510 = vsel %vm231, %v503, 0.0
      %511 = vst [vmem:[#allocation2 + $0x140] sm:$0xff] %v507
      %512 = vst [vmem:[#allocation2 + $0x148] sm:$0xff] %v508
      %513 = vst [vmem:[#allocation2 + $0x150] sm:$0xff] %v509
      %514 = vst [vmem:[#allocation2 + $0x158] sm:$0xff] %v510
      %515 = vrot.lane.b32.xlu0 %v244, 7
      %v516 = vpop.permute.xlu0 %515
      %517 = vrot.lane.b32.xlu0 %v245, 7
      %v518 = vpop.permute.xlu0 %517
      %519 = vrot.lane.b32.xlu0 %v246, 7
      %v520 = vpop.permute.xlu0 %519
      %521 = vrot.lane.b32.xlu0 %v247, 7
      %v522 = vpop.permute.xlu0 %521
      %vm523 = vcmp.lt.s32.totalorder %v208, 7
      %v524 = vsel %vm523, %v520, %v522
      %v525 = vsel %vm523, %v518, %v520
      %v526 = vsel %vm523, %v516, %v518
      %v527 = vsel %vm523, %v522, %v516
      %vm528 = vmand %vm228, %vm240
      %vm529 = vmand %vm229, %vm241
      %vm530 = vmand %vm230, %vm242
      %vm531 = vmand %vm231, %vm243
      %v532 = vsel %vm528, %v527, 0.0
      %v533 = vsel %vm529, %v526, 0.0
      %v534 = vsel %vm530, %v525, 0.0
      %v535 = vsel %vm531, %v524, 0.0
      %536 = vst [vmem:[#allocation2 + $0x160] sm:$0xff] %v532
      %537 = vst [vmem:[#allocation2 + $0x168] sm:$0xff] %v533
      %538 = vst [vmem:[#allocation2 + $0x170] sm:$0xff] %v534
      %539 = vst [vmem:[#allocation2 + $0x178] sm:$0xff] %v535
      %540 = vrot.lane.b32.xlu0 %v244, 1
      %v541 = vpop.permute.xlu0 %540
      %542 = vrot.lane.b32.xlu0 %v245, 1
      %v543 = vpop.permute.xlu0 %542
      %544 = vrot.lane.b32.xlu0 %v246, 1
      %v545 = vpop.permute.xlu0 %544
      %546 = vrot.lane.b32.xlu0 %v247, 1
      %v547 = vpop.permute.xlu0 %546
      %vm548 = vcmp.lt.s32.totalorder %v208, 1
      %v549 = vsel %vm548, %v545, %v547
      %v550 = vsel %vm548, %v543, %v545
      %v551 = vsel %vm548, %v541, %v543
      %v552 = vsel %vm548, %v547, %v541
      %v553 = vsel %vm236, %v552, 0.0
      %v554 = vsel %vm237, %v551, 0.0
      %v555 = vsel %vm238, %v550, 0.0
      %v556 = vsel %vm239, %v549, 0.0
      %557 = vst [vmem:[#allocation2 + $0x180] sm:$0xff] %v553
      %558 = vst [vmem:[#allocation2 + $0x188] sm:$0xff] %v554
      %559 = vst [vmem:[#allocation2 + $0x190] sm:$0xff] %v555
      %560 = vst [vmem:[#allocation2 + $0x198] sm:$0xff] %v556
      %561 = vst [vmem:[#allocation2 + $0x1a0] sm:$0xff] %v244
      %562 = vst [vmem:[#allocation2 + $0x1a8] sm:$0xff] %v245
      %563 = vst [vmem:[#allocation2 + $0x1b0] sm:$0xff] %v246
      %564 = vst [vmem:[#allocation2 + $0x1b8] sm:$0xff] %v247
      %565 = vrot.lane.b32.xlu0 %v244, 127
      %v566 = vpop.permute.xlu0 %565
      %567 = vrot.lane.b32.xlu0 %v245, 127
      %v568 = vpop.permute.xlu0 %567
      %569 = vrot.lane.b32.xlu0 %v246, 127
      %v570 = vpop.permute.xlu0 %569
      %571 = vrot.lane.b32.xlu0 %v247, 127
      %v572 = vpop.permute.xlu0 %571
      %vm573 = vcmp.lt.s32.totalorder %v208, 127
      %v574 = vsel %vm573, %v570, %v572
      %v575 = vsel %vm573, %v568, %v570
      %v576 = vsel %vm573, %v566, %v568
      %v577 = vsel %vm573, %v572, %v566
      %v578 = vsel %vm240, %v576, 0.0
      %v579 = vsel %vm241, %v575, 0.0
      %v580 = vsel %vm242, %v574, 0.0
      %v581 = vsel %vm243, %v577, 0.0
      %582 = vst [vmem:[#allocation2 + $0x1c0] sm:$0xff] %v578
      %583 = vst [vmem:[#allocation2 + $0x1c8] sm:$0xff] %v579
      %584 = vst [vmem:[#allocation2 + $0x1d0] sm:$0xff] %v580
      %585 = vst [vmem:[#allocation2 + $0x1d8] sm:$0xff] %v581
      %586 = vrot.lane.b32.xlu0 %v244, 121
      %v587 = vpop.permute.xlu0 %586
      %588 = vrot.lane.b32.xlu0 %v245, 121
      %v589 = vpop.permute.xlu0 %588
      %590 = vrot.lane.b32.xlu0 %v246, 121
      %v591 = vpop.permute.xlu0 %590
      %592 = vrot.lane.b32.xlu0 %v247, 121
      %v593 = vpop.permute.xlu0 %592
      %vm594 = vcmp.lt.s32.totalorder %v208, 121
      %v595 = vsel %vm594, %v591, %v593
      %v596 = vsel %vm594, %v589, %v591
      %v597 = vsel %vm594, %v587, %v589
      %v598 = vsel %vm594, %v593, %v587
      %vm599 = vmand %vm232, %vm236
      %vm600 = vmand %vm233, %vm237
      %vm601 = vmand %vm234, %vm238
      %vm602 = vmand %vm235, %vm239
      %v603 = vsel %vm599, %v597, 0.0
      %v604 = vsel %vm600, %v596, 0.0
      %v605 = vsel %vm601, %v595, 0.0
      %v606 = vsel %vm602, %v598, 0.0
      %607 = vst [vmem:[#allocation2 + $0x1e0] sm:$0xff] %v603
      %608 = vst [vmem:[#allocation2 + $0x1e8] sm:$0xff] %v604
      %609 = vst [vmem:[#allocation2 + $0x1f0] sm:$0xff] %v605
      %610 = vst [vmem:[#allocation2 + $0x1f8] sm:$0xff] %v606
      %611 = vrot.lane.b32.xlu0 %v244, 120
      %v612 = vpop.permute.xlu0 %611
      %613 = vrot.lane.b32.xlu0 %v245, 120
      %v614 = vpop.permute.xlu0 %613
      %615 = vrot.lane.b32.xlu0 %v246, 120
      %v616 = vpop.permute.xlu0 %615
      %617 = vrot.lane.b32.xlu0 %v247, 120
      %v618 = vpop.permute.xlu0 %617
      %vm619 = vcmp.lt.s32.totalorder %v208, 120
      %v620 = vsel %vm619, %v616, %v618
      %v621 = vsel %vm619, %v614, %v616
      %v622 = vsel %vm619, %v612, %v614
      %v623 = vsel %vm619, %v618, %v612
      %v624 = vsel %vm232, %v622, 0.0
      %v625 = vsel %vm233, %v621, 0.0
      %v626 = vsel %vm234, %v620, 0.0
      %v627 = vsel %vm235, %v623, 0.0
      %628 = vst [vmem:[#allocation2 + $0x200] sm:$0xff] %v624
      %629 = vst [vmem:[#allocation2 + $0x208] sm:$0xff] %v625
      %630 = vst [vmem:[#allocation2 + $0x210] sm:$0xff] %v626
      %631 = vst [vmem:[#allocation2 + $0x218] sm:$0xff] %v627
      %632 = vrot.lane.b32.xlu0 %v244, 119
      %v633 = vpop.permute.xlu0 %632
      %634 = vrot.lane.b32.xlu0 %v245, 119
      %v635 = vpop.permute.xlu0 %634
      %636 = vrot.lane.b32.xlu0 %v246, 119
      %v637 = vpop.permute.xlu0 %636
      %638 = vrot.lane.b32.xlu0 %v247, 119
      %v639 = vpop.permute.xlu0 %638
      %vm640 = vcmp.lt.s32.totalorder %v208, 119
      %v641 = vsel %vm640, %v637, %v639
      %v642 = vsel %vm640, %v635, %v637
      %v643 = vsel %vm640, %v633, %v635
      %v644 = vsel %vm640, %v639, %v633
      %vm645 = vmand %vm232, %vm240
      %vm646 = vmand %vm233, %vm241
      %vm647 = vmand %vm234, %vm242
      %vm648 = vmand %vm235, %vm243
      %v649 = vsel %vm645, %v643, 0.0
      %v650 = vsel %vm646, %v642, 0.0
      %v651 = vsel %vm647, %v641, 0.0
      %v652 = vsel %vm648, %v644, 0.0
      %653 = vst [vmem:[#allocation2 + $0x220] sm:$0xff] %v649
      %654 = vst [vmem:[#allocation2 + $0x228] sm:$0xff] %v650
      %655 = vst [vmem:[#allocation2 + $0x230] sm:$0xff] %v651
      %656 = vst [vmem:[#allocation2 + $0x238] sm:$0xff] %v652
      %vm657 = vmand %vm224, %vm228
      %vm658 = vmand %vm225, %vm229
      %vm659 = vmand %vm226, %vm230
      %vm660 = vmand %vm227, %vm231
      %vm661 = vmand %vm657, %vm236
      %vm662 = vmand %vm658, %vm237
      %vm663 = vmand %vm659, %vm238
      %vm664 = vmand %vm660, %vm239
      %v665 = vsel %vm661, %v259, 0.0
      %v666 = vsel %vm662, %v258, 0.0
      %v667 = vsel %vm663, %v257, 0.0
      %v668 = vsel %vm664, %v260, 0.0
      %669 = vst [vmem:[#allocation2 + $0x240] sm:$0xff] %v665
      %670 = vst [vmem:[#allocation2 + $0x248] sm:$0xff] %v666
      %671 = vst [vmem:[#allocation2 + $0x250] sm:$0xff] %v667
      %672 = vst [vmem:[#allocation2 + $0x258] sm:$0xff] %v668
      %v673 = vsel %vm657, %v288, 0.0
      %v674 = vsel %vm658, %v287, 0.0
      %v675 = vsel %vm659, %v286, 0.0
      %v676 = vsel %vm660, %v289, 0.0
      %677 = vst [vmem:[#allocation2 + $0x260] sm:$0xff] %v673
      %678 = vst [vmem:[#allocation2 + $0x268] sm:$0xff] %v674
      %679 = vst [vmem:[#allocation2 + $0x270] sm:$0xff] %v675
      %680 = vst [vmem:[#allocation2 + $0x278] sm:$0xff] %v676
      %vm681 = vmand %vm657, %vm240
      %vm682 = vmand %vm658, %vm241
      %vm683 = vmand %vm659, %vm242
      %vm684 = vmand %vm660, %vm243
      %v685 = vsel %vm681, %v309, 0.0
      %v686 = vsel %vm682, %v308, 0.0
      %v687 = vsel %vm683, %v307, 0.0
      %v688 = vsel %vm684, %v310, 0.0
      %689 = vst [vmem:[#allocation2 + $0x280] sm:$0xff] %v685
      %690 = vst [vmem:[#allocation2 + $0x288] sm:$0xff] %v686
      %691 = vst [vmem:[#allocation2 + $0x290] sm:$0xff] %v687
      %692 = vst [vmem:[#allocation2 + $0x298] sm:$0xff] %v688
      %vm693 = vmand %vm224, %vm236
      %vm694 = vmand %vm225, %vm237
      %vm695 = vmand %vm226, %vm238
      %vm696 = vmand %vm227, %vm239
      %v697 = vsel %vm693, %v334, 0.0
      %v698 = vsel %vm694, %v333, 0.0
      %v699 = vsel %vm695, %v332, 0.0
      %v700 = vsel %vm696, %v335, 0.0
      %701 = vst [vmem:[#allocation2 + $0x2a0] sm:$0xff] %v697
      %702 = vst [vmem:[#allocation2 + $0x2a8] sm:$0xff] %v698
      %703 = vst [vmem:[#allocation2 + $0x2b0] sm:$0xff] %v699
      %704 = vst [vmem:[#allocation2 + $0x2b8] sm:$0xff] %v700
      %v705 = vsel %vm224, %v359, 0.0
      %v706 = vsel %vm225, %v358, 0.0
      %v707 = vsel %vm226, %v357, 0.0
      %v708 = vsel %vm227, %v360, 0.0
      %709 = vst [vmem:[#allocation2 + $0x2c0] sm:$0xff] %v705
      %710 = vst [vmem:[#allocation2 + $0x2c8] sm:$0xff] %v706
      %711 = vst [vmem:[#allocation2 + $0x2d0] sm:$0xff] %v707
      %712 = vst [vmem:[#allocation2 + $0x2d8] sm:$0xff] %v708
      %vm713 = vmand %vm224, %vm240
      %vm714 = vmand %vm225, %vm241
      %vm715 = vmand %vm226, %vm242
      %vm716 = vmand %vm227, %vm243
      %v717 = vsel %vm713, %v380, 0.0
      %v718 = vsel %vm714, %v379, 0.0
      %v719 = vsel %vm715, %v378, 0.0
      %v720 = vsel %vm716, %v381, 0.0
      %721 = vst [vmem:[#allocation2 + $0x2e0] sm:$0xff] %v717
      %722 = vst [vmem:[#allocation2 + $0x2e8] sm:$0xff] %v718
      %723 = vst [vmem:[#allocation2 + $0x2f0] sm:$0xff] %v719
      %724 = vst [vmem:[#allocation2 + $0x2f8] sm:$0xff] %v720
      %vm725 = vmand %vm224, %vm232
      %vm726 = vmand %vm225, %vm233
      %vm727 = vmand %vm226, %vm234
      %vm728 = vmand %vm227, %vm235
      %vm729 = vmand %vm725, %vm236
      %vm730 = vmand %vm726, %vm237
      %vm731 = vmand %vm727, %vm238
      %vm732 = vmand %vm728, %vm239
      %v733 = vsel %vm729, %v405, 0.0
      %v734 = vsel %vm730, %v404, 0.0
      %v735 = vsel %vm731, %v403, 0.0
      %v736 = vsel %vm732, %v406, 0.0
      %737 = vst [vmem:[#allocation2 + $0x300] sm:$0xff] %v733
      %738 = vst [vmem:[#allocation2 + $0x308] sm:$0xff] %v734
      %739 = vst [vmem:[#allocation2 + $0x310] sm:$0xff] %v735
      %740 = vst [vmem:[#allocation2 + $0x318] sm:$0xff] %v736
      %v741 = vsel %vm725, %v434, 0.0
      %v742 = vsel %vm726, %v433, 0.0
      %v743 = vsel %vm727, %v432, 0.0
      %v744 = vsel %vm728, %v435, 0.0
      %745 = vst [vmem:[#allocation2 + $0x320] sm:$0xff] %v741
      %746 = vst [vmem:[#allocation2 + $0x328] sm:$0xff] %v742
      %747 = vst [vmem:[#allocation2 + $0x330] sm:$0xff] %v743
      %748 = vst [vmem:[#allocation2 + $0x338] sm:$0xff] %v744
      %vm749 = vmand %vm725, %vm240
      %vm750 = vmand %vm726, %vm241
      %vm751 = vmand %vm727, %vm242
      %vm752 = vmand %vm728, %vm243
      %v753 = vsel %vm749, %v455, 0.0
      %v754 = vsel %vm750, %v454, 0.0
      %v755 = vsel %vm751, %v453, 0.0
      %v756 = vsel %vm752, %v456, 0.0
      %757 = vst [vmem:[#allocation2 + $0x340] sm:$0xff] %v753
      %758 = vst [vmem:[#allocation2 + $0x348] sm:$0xff] %v754
      %759 = vst [vmem:[#allocation2 + $0x350] sm:$0xff] %v755
      %760 = vst [vmem:[#allocation2 + $0x358] sm:$0xff] %v756
      %v761 = vld [vmem:[#allocation2] sm:$0xff]
      %v762 = vld [vmem:[#allocation2 + $0x8] sm:$0xff]
      %v763 = vld [vmem:[#allocation2 + $0x10] sm:$0xff]
      %v764 = vld [vmem:[#allocation2 + $0x18] sm:$0xff]
      %v765 = vld [vmem:[#allocation2 + $0x20] sm:$0xff]
      %v766 = vld [vmem:[#allocation2 + $0x28] sm:$0xff]
      %v767 = vld [vmem:[#allocation2 + $0x30] sm:$0xff]
      %v768 = vld [vmem:[#allocation2 + $0x38] sm:$0xff]
      %v769 = vld [vmem:[#allocation2 + $0x40] sm:$0xff]
      %v770 = vld [vmem:[#allocation2 + $0x48] sm:$0xff]
      %v771 = vld [vmem:[#allocation2 + $0x50] sm:$0xff]
      %v772 = vld [vmem:[#allocation2 + $0x58] sm:$0xff]
      %v773 = vld [vmem:[#allocation2 + $0x60] sm:$0xff]
      %v774 = vld [vmem:[#allocation2 + $0x68] sm:$0xff]
      %v775 = vld [vmem:[#allocation2 + $0x70] sm:$0xff]
      %v776 = vld [vmem:[#allocation2 + $0x78] sm:$0xff]
      %v777 = vld [vmem:[#allocation2 + $0x80] sm:$0xff]
      %v778 = vld [vmem:[#allocation2 + $0x88] sm:$0xff]
      %v779 = vld [vmem:[#allocation2 + $0x90] sm:$0xff]
      %v780 = vld [vmem:[#allocation2 + $0x98] sm:$0xff]
      %v781 = vld [vmem:[#allocation2 + $0xa0] sm:$0xff]
      %v782 = vld [vmem:[#allocation2 + $0xa8] sm:$0xff]
      %v783 = vld [vmem:[#allocation2 + $0xb0] sm:$0xff]
      %v784 = vld [vmem:[#allocation2 + $0xb8] sm:$0xff]
      %v785 = vld [vmem:[#allocation2 + $0xc0] sm:$0xff]
      %v786 = vld [vmem:[#allocation2 + $0xc8] sm:$0xff]
      %v787 = vld [vmem:[#allocation2 + $0xd0] sm:$0xff]
      %v788 = vld [vmem:[#allocation2 + $0xd8] sm:$0xff]
      %v789 = vld [vmem:[#allocation2 + $0xe0] sm:$0xff]
      %v790 = vld [vmem:[#allocation2 + $0xe8] sm:$0xff]
      %v791 = vld [vmem:[#allocation2 + $0xf0] sm:$0xff]
      %v792 = vld [vmem:[#allocation2 + $0xf8] sm:$0xff]
      %v793 = vld [vmem:[#allocation2 + $0x100] sm:$0xff]
      %v794 = vld [vmem:[#allocation2 + $0x108] sm:$0xff]
      %v795 = vld [vmem:[#allocation2 + $0x110] sm:$0xff]
      %v796 = vld [vmem:[#allocation2 + $0x118] sm:$0xff]
      %v797 = vld [vmem:[#allocation2 + $0x120] sm:$0xff]
      %v798 = vld [vmem:[#allocation2 + $0x128] sm:$0xff]
      %v799 = vld [vmem:[#allocation2 + $0x130] sm:$0xff]
      %v800 = vld [vmem:[#allocation2 + $0x138] sm:$0xff]
      %v801 = vld [vmem:[#allocation2 + $0x140] sm:$0xff]
      %v802 = vld [vmem:[#allocation2 + $0x148] sm:$0xff]
      %v803 = vld [vmem:[#allocation2 + $0x150] sm:$0xff]
      %v804 = vld [vmem:[#allocation2 + $0x158] sm:$0xff]
      %v805 = vld [vmem:[#allocation2 + $0x160] sm:$0xff]
      %v806 = vld [vmem:[#allocation2 + $0x168] sm:$0xff]
      %v807 = vld [vmem:[#allocation2 + $0x170] sm:$0xff]
      %v808 = vld [vmem:[#allocation2 + $0x178] sm:$0xff]
      %v809 = vld [vmem:[#allocation2 + $0x180] sm:$0xff]
      %v810 = vld [vmem:[#allocation2 + $0x188] sm:$0xff]
      %v811 = vld [vmem:[#allocation2 + $0x190] sm:$0xff]
      %v812 = vld [vmem:[#allocation2 + $0x198] sm:$0xff]
      %v813 = vld [vmem:[#allocation2 + $0x1a0] sm:$0xff]
      %v814 = vld [vmem:[#allocation2 + $0x1a8] sm:$0xff]
      %v815 = vld [vmem:[#allocation2 + $0x1b0] sm:$0xff]
      %v816 = vld [vmem:[#allocation2 + $0x1b8] sm:$0xff]
      %v817 = vld [vmem:[#allocation2 + $0x1c0] sm:$0xff]
      %v818 = vld [vmem:[#allocation2 + $0x1c8] sm:$0xff]
      %v819 = vld [vmem:[#allocation2 + $0x1d0] sm:$0xff]
      %v820 = vld [vmem:[#allocation2 + $0x1d8] sm:$0xff]
      %v821 = vld [vmem:[#allocation2 + $0x1e0] sm:$0xff]
      %v822 = vld [vmem:[#allocation2 + $0x1e8] sm:$0xff]
      %v823 = vld [vmem:[#allocation2 + $0x1f0] sm:$0xff]
      %v824 = vld [vmem:[#allocation2 + $0x1f8] sm:$0xff]
      %v825 = vld [vmem:[#allocation2 + $0x200] sm:$0xff]
      %v826 = vld [vmem:[#allocation2 + $0x208] sm:$0xff]
      %v827 = vld [vmem:[#allocation2 + $0x210] sm:$0xff]
      %v828 = vld [vmem:[#allocation2 + $0x218] sm:$0xff]
      %v829 = vld [vmem:[#allocation2 + $0x220] sm:$0xff]
      %v830 = vld [vmem:[#allocation2 + $0x228] sm:$0xff]
      %v831 = vld [vmem:[#allocation2 + $0x230] sm:$0xff]
      %v832 = vld [vmem:[#allocation2 + $0x238] sm:$0xff]
      %v833 = vld [vmem:[#allocation2 + $0x240] sm:$0xff]
      %v834 = vld [vmem:[#allocation2 + $0x248] sm:$0xff]
      %v835 = vld [vmem:[#allocation2 + $0x250] sm:$0xff]
      %v836 = vld [vmem:[#allocation2 + $0x258] sm:$0xff]
      %v837 = vld [vmem:[#allocation2 + $0x260] sm:$0xff]
      %v838 = vld [vmem:[#allocation2 + $0x268] sm:$0xff]
      %v839 = vld [vmem:[#allocation2 + $0x270] sm:$0xff]
      %v840 = vld [vmem:[#allocation2 + $0x278] sm:$0xff]
      %v841 = vld [vmem:[#allocation2 + $0x280] sm:$0xff]
      %v842 = vld [vmem:[#allocation2 + $0x288] sm:$0xff]
      %v843 = vld [vmem:[#allocation2 + $0x290] sm:$0xff]
      %v844 = vld [vmem:[#allocation2 + $0x298] sm:$0xff]
      %v845 = vld [vmem:[#allocation2 + $0x2a0] sm:$0xff]
      %v846 = vld [vmem:[#allocation2 + $0x2a8] sm:$0xff]
      %v847 = vld [vmem:[#allocation2 + $0x2b0] sm:$0xff]
      %v848 = vld [vmem:[#allocation2 + $0x2b8] sm:$0xff]
      %v849 = vld [vmem:[#allocation2 + $0x2c0] sm:$0xff]
      %v850 = vld [vmem:[#allocation2 + $0x2c8] sm:$0xff]
      %v851 = vld [vmem:[#allocation2 + $0x2d0] sm:$0xff]
      %v852 = vld [vmem:[#allocation2 + $0x2d8] sm:$0xff]
      %v853 = vld [vmem:[#allocation2 + $0x2e0] sm:$0xff]
      %v854 = vld [vmem:[#allocation2 + $0x2e8] sm:$0xff]
      %v855 = vld [vmem:[#allocation2 + $0x2f0] sm:$0xff]
      %v856 = vld [vmem:[#allocation2 + $0x2f8] sm:$0xff]
      %v857 = vld [vmem:[#allocation2 + $0x300] sm:$0xff]
      %v858 = vld [vmem:[#allocation2 + $0x308] sm:$0xff]
      %v859 = vld [vmem:[#allocation2 + $0x310] sm:$0xff]
      %v860 = vld [vmem:[#allocation2 + $0x318] sm:$0xff]
      %v861 = vld [vmem:[#allocation2 + $0x320] sm:$0xff]
      %v862 = vld [vmem:[#allocation2 + $0x328] sm:$0xff]
      %v863 = vld [vmem:[#allocation2 + $0x330] sm:$0xff]
      %v864 = vld [vmem:[#allocation2 + $0x338] sm:$0xff]
      %v865 = vld [vmem:[#allocation2 + $0x340] sm:$0xff]
      %v866 = vld [vmem:[#allocation2 + $0x348] sm:$0xff]
      %v867 = vld [vmem:[#allocation2 + $0x350] sm:$0xff]
      %v868 = vld [vmem:[#allocation2 + $0x358] sm:$0xff]
      %v869 = vld [vmem:[#allocation2 + $0x360] sm:$0xff]
      %v870 = vld [vmem:[#allocation2 + $0x368] sm:$0xff]
      %v871 = vld [vmem:[#allocation2 + $0x370] sm:$0xff]
      %v872 = vld [vmem:[#allocation2 + $0x378] sm:$0xff]
      %v873 = vld [vmem:[#allocation2 + $0x380] sm:$0xff]
      %v874 = vld [vmem:[#allocation2 + $0x388] sm:$0xff]
      %v875 = vld [vmem:[#allocation2 + $0x390] sm:$0xff]
      %v876 = vld [vmem:[#allocation2 + $0x398] sm:$0xff]
      %v877 = vld [vmem:[#allocation2 + $0x3a0] sm:$0xff]
      %v878 = vld [vmem:[#allocation2 + $0x3a8] sm:$0xff]
      %v879 = vld [vmem:[#allocation2 + $0x3b0] sm:$0xff]
      %v880 = vld [vmem:[#allocation2 + $0x3b8] sm:$0xff]
      %v881 = vld [vmem:[#allocation2 + $0x3c0] sm:$0xff]
      %v882 = vld [vmem:[#allocation2 + $0x3c8] sm:$0xff]
      %v883 = vld [vmem:[#allocation2 + $0x3d0] sm:$0xff]
      %v884 = vld [vmem:[#allocation2 + $0x3d8] sm:$0xff]
      %v885 = vld [vmem:[#allocation2 + $0x3e0] sm:$0xff]
      %v886 = vld [vmem:[#allocation2 + $0x3e8] sm:$0xff]
      %v887 = vld [vmem:[#allocation2 + $0x3f0] sm:$0xff]
      %v888 = vld [vmem:[#allocation2 + $0x3f8] sm:$0xff]
      %v889 = vpack.c.bf16 %v765, %v761
      %v890 = vpack.c.bf16 %v766, %v762
      %v891 = vpack.c.bf16 %v767, %v763
      %v892 = vpack.c.bf16 %v768, %v764
      %v893 = vpack.c.bf16 %v773, %v769
      %v894 = vpack.c.bf16 %v774, %v770
      %v895 = vpack.c.bf16 %v775, %v771
      %v896 = vpack.c.bf16 %v776, %v772
      %v897 = vpack.c.bf16 %v781, %v777
      %v898 = vpack.c.bf16 %v782, %v778
      %v899 = vpack.c.bf16 %v783, %v779
      %v900 = vpack.c.bf16 %v784, %v780
      %v901 = vpack.c.bf16 %v789, %v785
      %v902 = vpack.c.bf16 %v790, %v786
      %v903 = vpack.c.bf16 %v791, %v787
      %v904 = vpack.c.bf16 %v792, %v788
      %v905 = vpack.c.bf16 %v797, %v793
      %v906 = vpack.c.bf16 %v798, %v794
      %v907 = vpack.c.bf16 %v799, %v795
      %v908 = vpack.c.bf16 %v800, %v796
      %v909 = vpack.c.bf16 %v805, %v801
      %v910 = vpack.c.bf16 %v806, %v802
      %v911 = vpack.c.bf16 %v807, %v803
      %v912 = vpack.c.bf16 %v808, %v804
      %v913 = vpack.c.bf16 %v813, %v809
      %v914 = vpack.c.bf16 %v814, %v810
      %v915 = vpack.c.bf16 %v815, %v811
      %v916 = vpack.c.bf16 %v816, %v812
      %v917 = vpack.c.bf16 %v821, %v817
      %v918 = vpack.c.bf16 %v822, %v818
      %v919 = vpack.c.bf16 %v823, %v819
      %v920 = vpack.c.bf16 %v824, %v820
      %v921 = vpack.c.bf16 %v829, %v825
      %v922 = vpack.c.bf16 %v830, %v826
      %v923 = vpack.c.bf16 %v831, %v827
      %v924 = vpack.c.bf16 %v832, %v828
      %v925 = vpack.c.bf16 %v837, %v833
      %v926 = vpack.c.bf16 %v838, %v834
      %v927 = vpack.c.bf16 %v839, %v835
      %v928 = vpack.c.bf16 %v840, %v836
      %v929 = vpack.c.bf16 %v845, %v841
      %v930 = vpack.c.bf16 %v846, %v842
      %v931 = vpack.c.bf16 %v847, %v843
      %v932 = vpack.c.bf16 %v848, %v844
      %v933 = vpack.c.bf16 %v853, %v849
      %v934 = vpack.c.bf16 %v854, %v850
      %v935 = vpack.c.bf16 %v855, %v851
      %v936 = vpack.c.bf16 %v856, %v852
      %v937 = vpack.c.bf16 %v861, %v857
      %v938 = vpack.c.bf16 %v862, %v858
      %v939 = vpack.c.bf16 %v863, %v859
      %v940 = vpack.c.bf16 %v864, %v860
      %v941 = vpack.c.bf16 %v869, %v865
      %v942 = vpack.c.bf16 %v870, %v866
      %v943 = vpack.c.bf16 %v871, %v867
      %v944 = vpack.c.bf16 %v872, %v868
      %v945 = vpack.c.bf16 %v877, %v873
      %v946 = vpack.c.bf16 %v878, %v874
      %v947 = vpack.c.bf16 %v879, %v875
      %v948 = vpack.c.bf16 %v880, %v876
      %v949 = vpack.c.bf16 %v885, %v881
      %v950 = vpack.c.bf16 %v886, %v882
      %v951 = vpack.c.bf16 %v887, %v883
      %v952 = vpack.c.bf16 %v888, %v884
      %v953 = vld [vmem:[%s1] sm:$0xff]
      %v955 = vunpack.c.l.b16 %v953
      %v956 = vunpack.c.h.b16 %v953
      %v957 = vpack.c.b16 %v955, %v955
      %v958 = vpack.c.b16 %v956, %v956
      %961 = vmatprep.subr.bf16.mxu0 %v918
      %962 = vmatpush1.bf16.msra.mxu0 %v917
      %963 = vmatprep.subr.bf16.mxu0 %v914
      %964 = vmatpush1.bf16.msra.mxu0 %v913
      %965 = vmatprep.subr.bf16.mxu0 %v910
      %966 = vmatpush1.bf16.msra.mxu0 %v909
      %967 = vmatprep.subr.bf16.mxu0 %v906
      %968 = vmatpush1.bf16.msra.mxu0 %v905
      %969 = vmatprep.subr.bf16.mxu0 %v902
      %970 = vmatpush1.bf16.msra.mxu0 %v901
      %971 = vmatprep.subr.bf16.mxu0 %v898
      %972 = vmatpush1.bf16.msra.mxu0 %v897
      %973 = vmatprep.subr.bf16.mxu0 %v894
      %974 = vmatpush1.bf16.msra.mxu0 %v893
      %975 = vmatprep.subr.bf16.mxu0 %v890
      %976 = vmatpush1.bf16.msra.mxu0 %v889
      %977 = vmatprep.subr.bf16.mxu0 %v950
      %978 = vmatpush2.bf16.msra.mxu0 %v949
      %979 = vmatprep.subr.bf16.mxu0 %v946
      %980 = vmatpush2.bf16.msra.mxu0 %v945
      %981 = vmatprep.subr.bf16.mxu0 %v942
      %982 = vmatpush2.bf16.msra.mxu0 %v941
      %983 = vmatprep.subr.bf16.mxu0 %v938
      %984 = vmatpush2.bf16.msra.mxu0 %v937
      %985 = vmatprep.subr.bf16.mxu0 %v934
      %986 = vmatpush2.bf16.msra.mxu0 %v933
      %987 = vmatprep.subr.bf16.mxu0 %v930
      %988 = vmatpush2.bf16.msra.mxu0 %v929
      %989 = vmatprep.subr.bf16.mxu0 %v926
      %990 = vmatpush2.bf16.msra.mxu0 %v925
      %991 = vmatprep.subr.bf16.mxu0 %v922
      %992 = vmatpush2.bf16.msra.mxu0 %v921
      %993 = vmatprep.mubr.bf16.mxu0 %v958
      %994 = vmatmul.mubr.bf16.gmra.mxu0 %v957
      %v995 = vpop.f32.mrf.mxu0
      %v996 = vadd.f32 0.0, %v995
      %v997 = vpop.f32.mrf.mxu0
      %v998 = vadd.f32 0.0, %v997
      %v999 = vpop.f32.mrf.mxu0
      %v1000 = vpop.f32.mrf.mxu0
      %1001 = vdwg.mxu0
      %1002 = vmatprep.subr.bf16.mxu0 %v920
      %1003 = vmatpush1.bf16.msra.mxu0 %v919
      %1004 = vmatprep.subr.bf16.mxu0 %v916
      %1005 = vmatpush1.bf16.msra.mxu0 %v915
      %1006 = vmatprep.subr.bf16.mxu0 %v912
      %1007 = vmatpush1.bf16.msra.mxu0 %v911
      %1008 = vmatprep.subr.bf16.mxu0 %v908
      %1009 = vmatpush1.bf16.msra.mxu0 %v907
      %1010 = vmatprep.subr.bf16.mxu0 %v904
      %1011 = vmatpush1.bf16.msra.mxu0 %v903
      %1012 = vmatprep.subr.bf16.mxu0 %v900
      %1013 = vmatpush1.bf16.msra.mxu0 %v899
      %1014 = vmatprep.subr.bf16.mxu0 %v896
      %1015 = vmatpush1.bf16.msra.mxu0 %v895
      %1016 = vmatprep.subr.bf16.mxu0 %v892
      %1017 = vmatpush1.bf16.msra.mxu0 %v891
      %1018 = vmatprep.subr.bf16.mxu0 %v952
      %1019 = vmatpush2.bf16.msra.mxu0 %v951
      %1020 = vmatprep.subr.bf16.mxu0 %v948
      %1021 = vmatpush2.bf16.msra.mxu0 %v947
      %1022 = vmatprep.subr.bf16.mxu0 %v944
      %1023 = vmatpush2.bf16.msra.mxu0 %v943
      %1024 = vmatprep.subr.bf16.mxu0 %v940
      %1025 = vmatpush2.bf16.msra.mxu0 %v939
      %1026 = vmatprep.subr.bf16.mxu0 %v936
      %1027 = vmatpush2.bf16.msra.mxu0 %v935
      %1028 = vmatprep.subr.bf16.mxu0 %v932
      %1029 = vmatpush2.bf16.msra.mxu0 %v931
      %1030 = vmatprep.subr.bf16.mxu0 %v928
      %1031 = vmatpush2.bf16.msra.mxu0 %v927
      %1032 = vmatprep.subr.bf16.mxu0 %v924
      %1033 = vmatpush2.bf16.msra.mxu0 %v923
      %1034 = vmatprep.mubr.bf16.mxu0 %v958
      %1035 = vmatmul.mubr.bf16.gmra.mxu0 %v957
      %v1036 = vpop.f32.mrf.mxu0
      %v1037 = vadd.f32 0.0, %v1036
      %v1038 = vpop.f32.mrf.mxu0
      %v1039 = vadd.f32 0.0, %v1038
      %v1040 = vpop.f32.mrf.mxu0
      %v1041 = vpop.f32.mrf.mxu0
      %1042 = vdwg.mxu0
      %v1043 = vmax.f32 %v996, 0.0
      %v1044 = vmax.f32 %v998, 0.0
      %v1045 = vmax.f32 %v1037, 0.0
      %v1046 = vmax.f32 %v1039, 0.0
      %1047 = vrot.lane.b32.xlu0 %v1043, 73
      %v1048 = vpop.permute.xlu0 %1047
      %1049 = vrot.lane.b32.xlu0 %v1044, 73
      %v1050 = vpop.permute.xlu0 %1049
      %1051 = vrot.lane.b32.xlu0 %v1045, 73
      %v1052 = vpop.permute.xlu0 %1051
      %1053 = vrot.lane.b32.xlu0 %v1046, 73
      %v1054 = vpop.permute.xlu0 %1053
      %v1055 = vsel %vm256, %v1052, %v1054
      %v1056 = vsel %vm256, %v1050, %v1052
      %v1057 = vsel %vm256, %v1048, %v1050
      %v1058 = vsel %vm256, %v1054, %v1048
      %v1059 = vsel %vm265, %v1058, 0.0
      %v1060 = vsel %vm266, %v1057, 0.0
      %v1061 = vsel %vm267, %v1056, 0.0
      %v1062 = vsel %vm268, %v1055, 0.0
      %1063 = vst [vmem:[#allocation2] sm:$0xff] %v1059
      %1064 = vst [vmem:[#allocation2 + $0x8] sm:$0xff] %v1060
      %1065 = vst [vmem:[#allocation2 + $0x10] sm:$0xff] %v1061
      %1066 = vst [vmem:[#allocation2 + $0x18] sm:$0xff] %v1062
      %1067 = vrot.lane.b32.xlu0 %v1043, 72
      %v1068 = vpop.permute.xlu0 %1067
      %1069 = vrot.lane.b32.xlu0 %v1044, 72
      %v1070 = vpop.permute.xlu0 %1069
      %1071 = vrot.lane.b32.xlu0 %v1045, 72
      %v1072 = vpop.permute.xlu0 %1071
      %1073 = vrot.lane.b32.xlu0 %v1046, 72
      %v1074 = vpop.permute.xlu0 %1073
      %v1075 = vsel %vm285, %v1072, %v1074
      %v1076 = vsel %vm285, %v1070, %v1072
      %v1077 = vsel %vm285, %v1068, %v1070
      %v1078 = vsel %vm285, %v1074, %v1068
      %v1079 = vsel %vm261, %v1078, 0.0
      %v1080 = vsel %vm262, %v1077, 0.0
      %v1081 = vsel %vm263, %v1076, 0.0
      %v1082 = vsel %vm264, %v1075, 0.0
      %1083 = vst [vmem:[#allocation2 + $0x20] sm:$0xff] %v1079
      %1084 = vst [vmem:[#allocation2 + $0x28] sm:$0xff] %v1080
      %1085 = vst [vmem:[#allocation2 + $0x30] sm:$0xff] %v1081
      %1086 = vst [vmem:[#allocation2 + $0x38] sm:$0xff] %v1082
      %1087 = vrot.lane.b32.xlu0 %v1043, 71
      %v1088 = vpop.permute.xlu0 %1087
      %1089 = vrot.lane.b32.xlu0 %v1044, 71
      %v1090 = vpop.permute.xlu0 %1089
      %1091 = vrot.lane.b32.xlu0 %v1045, 71
      %v1092 = vpop.permute.xlu0 %1091
      %1093 = vrot.lane.b32.xlu0 %v1046, 71
      %v1094 = vpop.permute.xlu0 %1093
      %v1095 = vsel %vm306, %v1092, %v1094
      %v1096 = vsel %vm306, %v1090, %v1092
      %v1097 = vsel %vm306, %v1088, %v1090
      %v1098 = vsel %vm306, %v1094, %v1088
      %v1099 = vsel %vm311, %v1098, 0.0
      %v1100 = vsel %vm312, %v1097, 0.0
      %v1101 = vsel %vm313, %v1096, 0.0
      %v1102 = vsel %vm314, %v1095, 0.0
      %1103 = vst [vmem:[#allocation2 + $0x40] sm:$0xff] %v1099
      %1104 = vst [vmem:[#allocation2 + $0x48] sm:$0xff] %v1100
      %1105 = vst [vmem:[#allocation2 + $0x50] sm:$0xff] %v1101
      %1106 = vst [vmem:[#allocation2 + $0x58] sm:$0xff] %v1102
      %1107 = vrot.lane.b32.xlu0 %v1043, 65
      %v1108 = vpop.permute.xlu0 %1107
      %1109 = vrot.lane.b32.xlu0 %v1044, 65
      %v1110 = vpop.permute.xlu0 %1109
      %1111 = vrot.lane.b32.xlu0 %v1045, 65
      %v1112 = vpop.permute.xlu0 %1111
      %1113 = vrot.lane.b32.xlu0 %v1046, 65
      %v1114 = vpop.permute.xlu0 %1113
      %v1115 = vsel %vm331, %v1112, %v1114
      %v1116 = vsel %vm331, %v1110, %v1112
      %v1117 = vsel %vm331, %v1108, %v1110
      %v1118 = vsel %vm331, %v1114, %v1108
      %v1119 = vsel %vm336, %v1118, 0.0
      %v1120 = vsel %vm337, %v1117, 0.0
      %v1121 = vsel %vm338, %v1116, 0.0
      %v1122 = vsel %vm339, %v1115, 0.0
      %1123 = vst [vmem:[#allocation2 + $0x60] sm:$0xff] %v1119
      %1124 = vst [vmem:[#allocation2 + $0x68] sm:$0xff] %v1120
      %1125 = vst [vmem:[#allocation2 + $0x70] sm:$0xff] %v1121
      %1126 = vst [vmem:[#allocation2 + $0x78] sm:$0xff] %v1122
      %1127 = vrot.lane.b32.xlu0 %v1043, 64
      %v1128 = vpop.permute.xlu0 %1127
      %1129 = vrot.lane.b32.xlu0 %v1044, 64
      %v1130 = vpop.permute.xlu0 %1129
      %1131 = vrot.lane.b32.xlu0 %v1045, 64
      %v1132 = vpop.permute.xlu0 %1131
      %1133 = vrot.lane.b32.xlu0 %v1046, 64
      %v1134 = vpop.permute.xlu0 %1133
      %v1135 = vsel %vm356, %v1132, %v1134
      %v1136 = vsel %vm356, %v1130, %v1132
      %v1137 = vsel %vm356, %v1128, %v1130
      %v1138 = vsel %vm356, %v1134, %v1128
      %v1139 = vsel %vm220, %v1138, 0.0
      %v1140 = vsel %vm221, %v1137, 0.0
      %v1141 = vsel %vm222, %v1136, 0.0
      %v1142 = vsel %vm223, %v1135, 0.0
      %1143 = vst [vmem:[#allocation2 + $0x80] sm:$0xff] %v1139
      %1144 = vst [vmem:[#allocation2 + $0x88] sm:$0xff] %v1140
      %1145 = vst [vmem:[#allocation2 + $0x90] sm:$0xff] %v1141
      %1146 = vst [vmem:[#allocation2 + $0x98] sm:$0xff] %v1142
      %1147 = vrot.lane.b32.xlu0 %v1043, 63
      %v1148 = vpop.permute.xlu0 %1147
      %1149 = vrot.lane.b32.xlu0 %v1044, 63
      %v1150 = vpop.permute.xlu0 %1149
      %1151 = vrot.lane.b32.xlu0 %v1045, 63
      %v1152 = vpop.permute.xlu0 %1151
      %1153 = vrot.lane.b32.xlu0 %v1046, 63
      %v1154 = vpop.permute.xlu0 %1153
      %v1155 = vsel %vm377, %v1152, %v1154
      %v1156 = vsel %vm377, %v1150, %v1152
      %v1157 = vsel %vm377, %v1148, %v1150
      %v1158 = vsel %vm377, %v1154, %v1148
      %v1159 = vsel %vm382, %v1158, 0.0
      %v1160 = vsel %vm383, %v1157, 0.0
      %v1161 = vsel %vm384, %v1156, 0.0
      %v1162 = vsel %vm385, %v1155, 0.0
      %1163 = vst [vmem:[#allocation2 + $0xa0] sm:$0xff] %v1159
      %1164 = vst [vmem:[#allocation2 + $0xa8] sm:$0xff] %v1160
      %1165 = vst [vmem:[#allocation2 + $0xb0] sm:$0xff] %v1161
      %1166 = vst [vmem:[#allocation2 + $0xb8] sm:$0xff] %v1162
      %1167 = vrot.lane.b32.xlu0 %v1043, 57
      %v1168 = vpop.permute.xlu0 %1167
      %1169 = vrot.lane.b32.xlu0 %v1044, 57
      %v1170 = vpop.permute.xlu0 %1169
      %1171 = vrot.lane.b32.xlu0 %v1045, 57
      %v1172 = vpop.permute.xlu0 %1171
      %1173 = vrot.lane.b32.xlu0 %v1046, 57
      %v1174 = vpop.permute.xlu0 %1173
      %v1175 = vsel %vm402, %v1172, %v1174
      %v1176 = vsel %vm402, %v1170, %v1172
      %v1177 = vsel %vm402, %v1168, %v1170
      %v1178 = vsel %vm402, %v1174, %v1168
      %v1179 = vsel %vm411, %v1178, 0.0
      %v1180 = vsel %vm412, %v1177, 0.0
      %v1181 = vsel %vm413, %v1176, 0.0
      %v1182 = vsel %vm414, %v1175, 0.0
      %1183 = vst [vmem:[#allocation2 + $0xc0] sm:$0xff] %v1179
      %1184 = vst [vmem:[#allocation2 + $0xc8] sm:$0xff] %v1180
      %1185 = vst [vmem:[#allocation2 + $0xd0] sm:$0xff] %v1181
      %1186 = vst [vmem:[#allocation2 + $0xd8] sm:$0xff] %v1182
      %1187 = vrot.lane.b32.xlu0 %v1043, 56
      %v1188 = vpop.permute.xlu0 %1187
      %1189 = vrot.lane.b32.xlu0 %v1044, 56
      %v1190 = vpop.permute.xlu0 %1189
      %1191 = vrot.lane.b32.xlu0 %v1045, 56
      %v1192 = vpop.permute.xlu0 %1191
      %1193 = vrot.lane.b32.xlu0 %v1046, 56
      %v1194 = vpop.permute.xlu0 %1193
      %v1195 = vsel %vm431, %v1192, %v1194
      %v1196 = vsel %vm431, %v1190, %v1192
      %v1197 = vsel %vm431, %v1188, %v1190
      %v1198 = vsel %vm431, %v1194, %v1188
      %v1199 = vsel %vm407, %v1198, 0.0
      %v1200 = vsel %vm408, %v1197, 0.0
      %v1201 = vsel %vm409, %v1196, 0.0
      %v1202 = vsel %vm410, %v1195, 0.0
      %1203 = vst [vmem:[#allocation2 + $0xe0] sm:$0xff] %v1199
      %1204 = vst [vmem:[#allocation2 + $0xe8] sm:$0xff] %v1200
      %1205 = vst [vmem:[#allocation2 + $0xf0] sm:$0xff] %v1201
      %1206 = vst [vmem:[#allocation2 + $0xf8] sm:$0xff] %v1202
      %1207 = vrot.lane.b32.xlu0 %v1043, 55
      %v1208 = vpop.permute.xlu0 %1207
      %1209 = vrot.lane.b32.xlu0 %v1044, 55
      %v1210 = vpop.permute.xlu0 %1209
      %1211 = vrot.lane.b32.xlu0 %v1045, 55
      %v1212 = vpop.permute.xlu0 %1211
      %1213 = vrot.lane.b32.xlu0 %v1046, 55
      %v1214 = vpop.permute.xlu0 %1213
      %v1215 = vsel %vm452, %v1212, %v1214
      %v1216 = vsel %vm452, %v1210, %v1212
      %v1217 = vsel %vm452, %v1208, %v1210
      %v1218 = vsel %vm452, %v1214, %v1208
      %v1219 = vsel %vm457, %v1218, 0.0
      %v1220 = vsel %vm458, %v1217, 0.0
      %v1221 = vsel %vm459, %v1216, 0.0
      %v1222 = vsel %vm460, %v1215, 0.0
      %1223 = vst [vmem:[#allocation2 + $0x100] sm:$0xff] %v1219
      %1224 = vst [vmem:[#allocation2 + $0x108] sm:$0xff] %v1220
      %1225 = vst [vmem:[#allocation2 + $0x110] sm:$0xff] %v1221
      %1226 = vst [vmem:[#allocation2 + $0x118] sm:$0xff] %v1222
      %1227 = vrot.lane.b32.xlu0 %v1043, 9
      %v1228 = vpop.permute.xlu0 %1227
      %1229 = vrot.lane.b32.xlu0 %v1044, 9
      %v1230 = vpop.permute.xlu0 %1229
      %1231 = vrot.lane.b32.xlu0 %v1045, 9
      %v1232 = vpop.permute.xlu0 %1231
      %1233 = vrot.lane.b32.xlu0 %v1046, 9
      %v1234 = vpop.permute.xlu0 %1233
      %v1235 = vsel %vm477, %v1232, %v1234
      %v1236 = vsel %vm477, %v1230, %v1232
      %v1237 = vsel %vm477, %v1228, %v1230
      %v1238 = vsel %vm477, %v1234, %v1228
      %v1239 = vsel %vm482, %v1238, 0.0
      %v1240 = vsel %vm483, %v1237, 0.0
      %v1241 = vsel %vm484, %v1236, 0.0
      %v1242 = vsel %vm485, %v1235, 0.0
      %1243 = vst [vmem:[#allocation2 + $0x120] sm:$0xff] %v1239
      %1244 = vst [vmem:[#allocation2 + $0x128] sm:$0xff] %v1240
      %1245 = vst [vmem:[#allocation2 + $0x130] sm:$0xff] %v1241
      %1246 = vst [vmem:[#allocation2 + $0x138] sm:$0xff] %v1242
      %1247 = vrot.lane.b32.xlu0 %v1043, 8
      %v1248 = vpop.permute.xlu0 %1247
      %1249 = vrot.lane.b32.xlu0 %v1044, 8
      %v1250 = vpop.permute.xlu0 %1249
      %1251 = vrot.lane.b32.xlu0 %v1045, 8
      %v1252 = vpop.permute.xlu0 %1251
      %1253 = vrot.lane.b32.xlu0 %v1046, 8
      %v1254 = vpop.permute.xlu0 %1253
      %v1255 = vsel %vm502, %v1252, %v1254
      %v1256 = vsel %vm502, %v1250, %v1252
      %v1257 = vsel %vm502, %v1248, %v1250
      %v1258 = vsel %vm502, %v1254, %v1248
      %v1259 = vsel %vm228, %v1258, 0.0
      %v1260 = vsel %vm229, %v1257, 0.0
      %v1261 = vsel %vm230, %v1256, 0.0
      %v1262 = vsel %vm231, %v1255, 0.0
      %1263 = vst [vmem:[#allocation2 + $0x140] sm:$0xff] %v1259
      %1264 = vst [vmem:[#allocation2 + $0x148] sm:$0xff] %v1260
      %1265 = vst [vmem:[#allocation2 + $0x150] sm:$0xff] %v1261
      %1266 = vst [vmem:[#allocation2 + $0x158] sm:$0xff] %v1262
      %1267 = vrot.lane.b32.xlu0 %v1043, 7
      %v1268 = vpop.permute.xlu0 %1267
      %1269 = vrot.lane.b32.xlu0 %v1044, 7
      %v1270 = vpop.permute.xlu0 %1269
      %1271 = vrot.lane.b32.xlu0 %v1045, 7
      %v1272 = vpop.permute.xlu0 %1271
      %1273 = vrot.lane.b32.xlu0 %v1046, 7
      %v1274 = vpop.permute.xlu0 %1273
      %v1275 = vsel %vm523, %v1272, %v1274
      %v1276 = vsel %vm523, %v1270, %v1272
      %v1277 = vsel %vm523, %v1268, %v1270
      %v1278 = vsel %vm523, %v1274, %v1268
      %v1279 = vsel %vm528, %v1278, 0.0
      %v1280 = vsel %vm529, %v1277, 0.0
      %v1281 = vsel %vm530, %v1276, 0.0
      %v1282 = vsel %vm531, %v1275, 0.0
      %1283 = vst [vmem:[#allocation2 + $0x160] sm:$0xff] %v1279
      %1284 = vst [vmem:[#allocation2 + $0x168] sm:$0xff] %v1280
      %1285 = vst [vmem:[#allocation2 + $0x170] sm:$0xff] %v1281
      %1286 = vst [vmem:[#allocation2 + $0x178] sm:$0xff] %v1282
      %1287 = vrot.lane.b32.xlu0 %v1043, 1
      %v1288 = vpop.permute.xlu0 %1287
      %1289 = vrot.lane.b32.xlu0 %v1044, 1
      %v1290 = vpop.permute.xlu0 %1289
      %1291 = vrot.lane.b32.xlu0 %v1045, 1
      %v1292 = vpop.permute.xlu0 %1291
      %1293 = vrot.lane.b32.xlu0 %v1046, 1
      %v1294 = vpop.permute.xlu0 %1293
      %v1295 = vsel %vm548, %v1292, %v1294
      %v1296 = vsel %vm548, %v1290, %v1292
      %v1297 = vsel %vm548, %v1288, %v1290
      %v1298 = vsel %vm548, %v1294, %v1288
      %v1299 = vsel %vm236, %v1298, 0.0
      %v1300 = vsel %vm237, %v1297, 0.0
      %v1301 = vsel %vm238, %v1296, 0.0
      %v1302 = vsel %vm239, %v1295, 0.0
      %1303 = vst [vmem:[#allocation2 + $0x180] sm:$0xff] %v1299
      %1304 = vst [vmem:[#allocation2 + $0x188] sm:$0xff] %v1300
      %1305 = vst [vmem:[#allocation2 + $0x190] sm:$0xff] %v1301
      %1306 = vst [vmem:[#allocation2 + $0x198] sm:$0xff] %v1302
      %1307 = vst [vmem:[#allocation2 + $0x1a0] sm:$0xff] %v1043
      %1308 = vst [vmem:[#allocation2 + $0x1a8] sm:$0xff] %v1044
      %1309 = vst [vmem:[#allocation2 + $0x1b0] sm:$0xff] %v1045
      %1310 = vst [vmem:[#allocation2 + $0x1b8] sm:$0xff] %v1046
      %1311 = vrot.lane.b32.xlu0 %v1043, 127
      %v1312 = vpop.permute.xlu0 %1311
      %1313 = vrot.lane.b32.xlu0 %v1044, 127
      %v1314 = vpop.permute.xlu0 %1313
      %1315 = vrot.lane.b32.xlu0 %v1045, 127
      %v1316 = vpop.permute.xlu0 %1315
      %1317 = vrot.lane.b32.xlu0 %v1046, 127
      %v1318 = vpop.permute.xlu0 %1317
      %v1319 = vsel %vm573, %v1316, %v1318
      %v1320 = vsel %vm573, %v1314, %v1316
      %v1321 = vsel %vm573, %v1312, %v1314
      %v1322 = vsel %vm573, %v1318, %v1312
      %v1323 = vsel %vm240, %v1321, 0.0
      %v1324 = vsel %vm241, %v1320, 0.0
      %v1325 = vsel %vm242, %v1319, 0.0
      %v1326 = vsel %vm243, %v1322, 0.0
      %1327 = vst [vmem:[#allocation2 + $0x1c0] sm:$0xff] %v1323
      %1328 = vst [vmem:[#allocation2 + $0x1c8] sm:$0xff] %v1324
      %1329 = vst [vmem:[#allocation2 + $0x1d0] sm:$0xff] %v1325
      %1330 = vst [vmem:[#allocation2 + $0x1d8] sm:$0xff] %v1326
      %1331 = vrot.lane.b32.xlu0 %v1043, 121
      %v1332 = vpop.permute.xlu0 %1331
      %1333 = vrot.lane.b32.xlu0 %v1044, 121
      %v1334 = vpop.permute.xlu0 %1333
      %1335 = vrot.lane.b32.xlu0 %v1045, 121
      %v1336 = vpop.permute.xlu0 %1335
      %1337 = vrot.lane.b32.xlu0 %v1046, 121
      %v1338 = vpop.permute.xlu0 %1337
      %v1339 = vsel %vm594, %v1336, %v1338
      %v1340 = vsel %vm594, %v1334, %v1336
      %v1341 = vsel %vm594, %v1332, %v1334
      %v1342 = vsel %vm594, %v1338, %v1332
      %v1343 = vsel %vm599, %v1341, 0.0
      %v1344 = vsel %vm600, %v1340, 0.0
      %v1345 = vsel %vm601, %v1339, 0.0
      %v1346 = vsel %vm602, %v1342, 0.0
      %1347 = vst [vmem:[#allocation2 + $0x1e0] sm:$0xff] %v1343
      %1348 = vst [vmem:[#allocation2 + $0x1e8] sm:$0xff] %v1344
      %1349 = vst [vmem:[#allocation2 + $0x1f0] sm:$0xff] %v1345
      %1350 = vst [vmem:[#allocation2 + $0x1f8] sm:$0xff] %v1346
      %1351 = vrot.lane.b32.xlu0 %v1043, 120
      %v1352 = vpop.permute.xlu0 %1351
      %1353 = vrot.lane.b32.xlu0 %v1044, 120
      %v1354 = vpop.permute.xlu0 %1353
      %1355 = vrot.lane.b32.xlu0 %v1045, 120
      %v1356 = vpop.permute.xlu0 %1355
      %1357 = vrot.lane.b32.xlu0 %v1046, 120
      %v1358 = vpop.permute.xlu0 %1357
      %v1359 = vsel %vm619, %v1356, %v1358
      %v1360 = vsel %vm619, %v1354, %v1356
      %v1361 = vsel %vm619, %v1352, %v1354
      %v1362 = vsel %vm619, %v1358, %v1352
      %v1363 = vsel %vm232, %v1361, 0.0
      %v1364 = vsel %vm233, %v1360, 0.0
      %v1365 = vsel %vm234, %v1359, 0.0
      %v1366 = vsel %vm235, %v1362, 0.0
      %1367 = vst [vmem:[#allocation2 + $0x200] sm:$0xff] %v1363
      %1368 = vst [vmem:[#allocation2 + $0x208] sm:$0xff] %v1364
      %1369 = vst [vmem:[#allocation2 + $0x210] sm:$0xff] %v1365
      %1370 = vst [vmem:[#allocation2 + $0x218] sm:$0xff] %v1366
      %1371 = vrot.lane.b32.xlu0 %v1043, 119
      %v1372 = vpop.permute.xlu0 %1371
      %1373 = vrot.lane.b32.xlu0 %v1044, 119
      %v1374 = vpop.permute.xlu0 %1373
      %1375 = vrot.lane.b32.xlu0 %v1045, 119
      %v1376 = vpop.permute.xlu0 %1375
      %1377 = vrot.lane.b32.xlu0 %v1046, 119
      %v1378 = vpop.permute.xlu0 %1377
      %v1379 = vsel %vm640, %v1376, %v1378
      %v1380 = vsel %vm640, %v1374, %v1376
      %v1381 = vsel %vm640, %v1372, %v1374
      %v1382 = vsel %vm640, %v1378, %v1372
      %v1383 = vsel %vm645, %v1381, 0.0
      %v1384 = vsel %vm646, %v1380, 0.0
      %v1385 = vsel %vm647, %v1379, 0.0
      %v1386 = vsel %vm648, %v1382, 0.0
      %1387 = vst [vmem:[#allocation2 + $0x220] sm:$0xff] %v1383
      %1388 = vst [vmem:[#allocation2 + $0x228] sm:$0xff] %v1384
      %1389 = vst [vmem:[#allocation2 + $0x230] sm:$0xff] %v1385
      %1390 = vst [vmem:[#allocation2 + $0x238] sm:$0xff] %v1386
      %v1391 = vsel %vm661, %v1057, 0.0
      %v1392 = vsel %vm662, %v1056, 0.0
      %v1393 = vsel %vm663, %v1055, 0.0
      %v1394 = vsel %vm664, %v1058, 0.0
      %1395 = vst [vmem:[#allocation2 + $0x240] sm:$0xff] %v1391
      %1396 = vst [vmem:[#allocation2 + $0x248] sm:$0xff] %v1392
      %1397 = vst [vmem:[#allocation2 + $0x250] sm:$0xff] %v1393
      %1398 = vst [vmem:[#allocation2 + $0x258] sm:$0xff] %v1394
      %v1399 = vsel %vm657, %v1077, 0.0
      %v1400 = vsel %vm658, %v1076, 0.0
      %v1401 = vsel %vm659, %v1075, 0.0
      %v1402 = vsel %vm660, %v1078, 0.0
      %1403 = vst [vmem:[#allocation2 + $0x260] sm:$0xff] %v1399
      %1404 = vst [vmem:[#allocation2 + $0x268] sm:$0xff] %v1400
      %1405 = vst [vmem:[#allocation2 + $0x270] sm:$0xff] %v1401
      %1406 = vst [vmem:[#allocation2 + $0x278] sm:$0xff] %v1402
      %v1407 = vsel %vm681, %v1097, 0.0
      %v1408 = vsel %vm682, %v1096, 0.0
      %v1409 = vsel %vm683, %v1095, 0.0
      %v1410 = vsel %vm684, %v1098, 0.0
      %1411 = vst [vmem:[#allocation2 + $0x280] sm:$0xff] %v1407
      %1412 = vst [vmem:[#allocation2 + $0x288] sm:$0xff] %v1408
      %1413 = vst [vmem:[#allocation2 + $0x290] sm:$0xff] %v1409
      %1414 = vst [vmem:[#allocation2 + $0x298] sm:$0xff] %v1410
      %v1415 = vsel %vm693, %v1117, 0.0
      %v1416 = vsel %vm694, %v1116, 0.0
      %v1417 = vsel %vm695, %v1115, 0.0
      %v1418 = vsel %vm696, %v1118, 0.0
      %1419 = vst [vmem:[#allocation2 + $0x2a0] sm:$0xff] %v1415
      %1420 = vst [vmem:[#allocation2 + $0x2a8] sm:$0xff] %v1416
      %1421 = vst [vmem:[#allocation2 + $0x2b0] sm:$0xff] %v1417
      %1422 = vst [vmem:[#allocation2 + $0x2b8] sm:$0xff] %v1418
      %v1423 = vsel %vm224, %v1137, 0.0
      %v1424 = vsel %vm225, %v1136, 0.0
      %v1425 = vsel %vm226, %v1135, 0.0
      %v1426 = vsel %vm227, %v1138, 0.0
      %1427 = vst [vmem:[#allocation2 + $0x2c0] sm:$0xff] %v1423
      %1428 = vst [vmem:[#allocation2 + $0x2c8] sm:$0xff] %v1424
      %1429 = vst [vmem:[#allocation2 + $0x2d0] sm:$0xff] %v1425
      %1430 = vst [vmem:[#allocation2 + $0x2d8] sm:$0xff] %v1426
      %v1431 = vsel %vm713, %v1157, 0.0
      %v1432 = vsel %vm714, %v1156, 0.0
      %v1433 = vsel %vm715, %v1155, 0.0
      %v1434 = vsel %vm716, %v1158, 0.0
      %1435 = vst [vmem:[#allocation2 + $0x2e0] sm:$0xff] %v1431
      %1436 = vst [vmem:[#allocation2 + $0x2e8] sm:$0xff] %v1432
      %1437 = vst [vmem:[#allocation2 + $0x2f0] sm:$0xff] %v1433
      %1438 = vst [vmem:[#allocation2 + $0x2f8] sm:$0xff] %v1434
      %v1439 = vsel %vm729, %v1177, 0.0
      %v1440 = vsel %vm730, %v1176, 0.0
      %v1441 = vsel %vm731, %v1175, 0.0
      %v1442 = vsel %vm732, %v1178, 0.0
      %1443 = vst [vmem:[#allocation2 + $0x300] sm:$0xff] %v1439
      %1444 = vst [vmem:[#allocation2 + $0x308] sm:$0xff] %v1440
      %1445 = vst [vmem:[#allocation2 + $0x310] sm:$0xff] %v1441
      %1446 = vst [vmem:[#allocation2 + $0x318] sm:$0xff] %v1442
      %v1447 = vsel %vm725, %v1197, 0.0
      %v1448 = vsel %vm726, %v1196, 0.0
      %v1449 = vsel %vm727, %v1195, 0.0
      %v1450 = vsel %vm728, %v1198, 0.0
      %1451 = vst [vmem:[#allocation2 + $0x320] sm:$0xff] %v1447
      %1452 = vst [vmem:[#allocation2 + $0x328] sm:$0xff] %v1448
      %1453 = vst [vmem:[#allocation2 + $0x330] sm:$0xff] %v1449
      %1454 = vst [vmem:[#allocation2 + $0x338] sm:$0xff] %v1450
      %v1455 = vsel %vm749, %v1217, 0.0
      %v1456 = vsel %vm750, %v1216, 0.0
      %v1457 = vsel %vm751, %v1215, 0.0
      %v1458 = vsel %vm752, %v1218, 0.0
      %1459 = vst [vmem:[#allocation2 + $0x340] sm:$0xff] %v1455
      %1460 = vst [vmem:[#allocation2 + $0x348] sm:$0xff] %v1456
      %1461 = vst [vmem:[#allocation2 + $0x350] sm:$0xff] %v1457
      %1462 = vst [vmem:[#allocation2 + $0x358] sm:$0xff] %v1458
      %v1463 = vld [vmem:[#allocation2] sm:$0xff]
      %v1464 = vld [vmem:[#allocation2 + $0x8] sm:$0xff]
      %v1465 = vld [vmem:[#allocation2 + $0x10] sm:$0xff]
      %v1466 = vld [vmem:[#allocation2 + $0x18] sm:$0xff]
      %v1467 = vld [vmem:[#allocation2 + $0x20] sm:$0xff]
      %v1468 = vld [vmem:[#allocation2 + $0x28] sm:$0xff]
      %v1469 = vld [vmem:[#allocation2 + $0x30] sm:$0xff]
      %v1470 = vld [vmem:[#allocation2 + $0x38] sm:$0xff]
      %v1471 = vld [vmem:[#allocation2 + $0x40] sm:$0xff]
      %v1472 = vld [vmem:[#allocation2 + $0x48] sm:$0xff]
      %v1473 = vld [vmem:[#allocation2 + $0x50] sm:$0xff]
      %v1474 = vld [vmem:[#allocation2 + $0x58] sm:$0xff]
      %v1475 = vld [vmem:[#allocation2 + $0x60] sm:$0xff]
      %v1476 = vld [vmem:[#allocation2 + $0x68] sm:$0xff]
      %v1477 = vld [vmem:[#allocation2 + $0x70] sm:$0xff]
      %v1478 = vld [vmem:[#allocation2 + $0x78] sm:$0xff]
      %v1479 = vld [vmem:[#allocation2 + $0x80] sm:$0xff]
      %v1480 = vld [vmem:[#allocation2 + $0x88] sm:$0xff]
      %v1481 = vld [vmem:[#allocation2 + $0x90] sm:$0xff]
      %v1482 = vld [vmem:[#allocation2 + $0x98] sm:$0xff]
      %v1483 = vld [vmem:[#allocation2 + $0xa0] sm:$0xff]
      %v1484 = vld [vmem:[#allocation2 + $0xa8] sm:$0xff]
      %v1485 = vld [vmem:[#allocation2 + $0xb0] sm:$0xff]
      %v1486 = vld [vmem:[#allocation2 + $0xb8] sm:$0xff]
      %v1487 = vld [vmem:[#allocation2 + $0xc0] sm:$0xff]
      %v1488 = vld [vmem:[#allocation2 + $0xc8] sm:$0xff]
      %v1489 = vld [vmem:[#allocation2 + $0xd0] sm:$0xff]
      %v1490 = vld [vmem:[#allocation2 + $0xd8] sm:$0xff]
      %v1491 = vld [vmem:[#allocation2 + $0xe0] sm:$0xff]
      %v1492 = vld [vmem:[#allocation2 + $0xe8] sm:$0xff]
      %v1493 = vld [vmem:[#allocation2 + $0xf0] sm:$0xff]
      %v1494 = vld [vmem:[#allocation2 + $0xf8] sm:$0xff]
      %v1495 = vld [vmem:[#allocation2 + $0x100] sm:$0xff]
      %v1496 = vld [vmem:[#allocation2 + $0x108] sm:$0xff]
      %v1497 = vld [vmem:[#allocation2 + $0x110] sm:$0xff]
      %v1498 = vld [vmem:[#allocation2 + $0x118] sm:$0xff]
      %v1499 = vld [vmem:[#allocation2 + $0x120] sm:$0xff]
      %v1500 = vld [vmem:[#allocation2 + $0x128] sm:$0xff]
      %v1501 = vld [vmem:[#allocation2 + $0x130] sm:$0xff]
      %v1502 = vld [vmem:[#allocation2 + $0x138] sm:$0xff]
      %v1503 = vld [vmem:[#allocation2 + $0x140] sm:$0xff]
      %v1504 = vld [vmem:[#allocation2 + $0x148] sm:$0xff]
      %v1505 = vld [vmem:[#allocation2 + $0x150] sm:$0xff]
      %v1506 = vld [vmem:[#allocation2 + $0x158] sm:$0xff]
      %v1507 = vld [vmem:[#allocation2 + $0x160] sm:$0xff]
      %v1508 = vld [vmem:[#allocation2 + $0x168] sm:$0xff]
      %v1509 = vld [vmem:[#allocation2 + $0x170] sm:$0xff]
      %v1510 = vld [vmem:[#allocation2 + $0x178] sm:$0xff]
      %v1511 = vld [vmem:[#allocation2 + $0x180] sm:$0xff]
      %v1512 = vld [vmem:[#allocation2 + $0x188] sm:$0xff]
      %v1513 = vld [vmem:[#allocation2 + $0x190] sm:$0xff]
      %v1514 = vld [vmem:[#allocation2 + $0x198] sm:$0xff]
      %v1515 = vld [vmem:[#allocation2 + $0x1a0] sm:$0xff]
      %v1516 = vld [vmem:[#allocation2 + $0x1a8] sm:$0xff]
      %v1517 = vld [vmem:[#allocation2 + $0x1b0] sm:$0xff]
      %v1518 = vld [vmem:[#allocation2 + $0x1b8] sm:$0xff]
      %v1519 = vld [vmem:[#allocation2 + $0x1c0] sm:$0xff]
      %v1520 = vld [vmem:[#allocation2 + $0x1c8] sm:$0xff]
      %v1521 = vld [vmem:[#allocation2 + $0x1d0] sm:$0xff]
      %v1522 = vld [vmem:[#allocation2 + $0x1d8] sm:$0xff]
      %v1523 = vld [vmem:[#allocation2 + $0x1e0] sm:$0xff]
      %v1524 = vld [vmem:[#allocation2 + $0x1e8] sm:$0xff]
      %v1525 = vld [vmem:[#allocation2 + $0x1f0] sm:$0xff]
      %v1526 = vld [vmem:[#allocation2 + $0x1f8] sm:$0xff]
      %v1527 = vld [vmem:[#allocation2 + $0x200] sm:$0xff]
      %v1528 = vld [vmem:[#allocation2 + $0x208] sm:$0xff]
      %v1529 = vld [vmem:[#allocation2 + $0x210] sm:$0xff]
      %v1530 = vld [vmem:[#allocation2 + $0x218] sm:$0xff]
      %v1531 = vld [vmem:[#allocation2 + $0x220] sm:$0xff]
      %v1532 = vld [vmem:[#allocation2 + $0x228] sm:$0xff]
      %v1533 = vld [vmem:[#allocation2 + $0x230] sm:$0xff]
      %v1534 = vld [vmem:[#allocation2 + $0x238] sm:$0xff]
      %v1535 = vld [vmem:[#allocation2 + $0x240] sm:$0xff]
      %v1536 = vld [vmem:[#allocation2 + $0x248] sm:$0xff]
      %v1537 = vld [vmem:[#allocation2 + $0x250] sm:$0xff]
      %v1538 = vld [vmem:[#allocation2 + $0x258] sm:$0xff]
      %v1539 = vld [vmem:[#allocation2 + $0x260] sm:$0xff]
      %v1540 = vld [vmem:[#allocation2 + $0x268] sm:$0xff]
      %v1541 = vld [vmem:[#allocation2 + $0x270] sm:$0xff]
      %v1542 = vld [vmem:[#allocation2 + $0x278] sm:$0xff]
      %v1543 = vld [vmem:[#allocation2 + $0x280] sm:$0xff]
      %v1544 = vld [vmem:[#allocation2 + $0x288] sm:$0xff]
      %v1545 = vld [vmem:[#allocation2 + $0x290] sm:$0xff]
      %v1546 = vld [vmem:[#allocation2 + $0x298] sm:$0xff]
      %v1547 = vld [vmem:[#allocation2 + $0x2a0] sm:$0xff]
      %v1548 = vld [vmem:[#allocation2 + $0x2a8] sm:$0xff]
      %v1549 = vld [vmem:[#allocation2 + $0x2b0] sm:$0xff]
      %v1550 = vld [vmem:[#allocation2 + $0x2b8] sm:$0xff]
      %v1551 = vld [vmem:[#allocation2 + $0x2c0] sm:$0xff]
      %v1552 = vld [vmem:[#allocation2 + $0x2c8] sm:$0xff]
      %v1553 = vld [vmem:[#allocation2 + $0x2d0] sm:$0xff]
      %v1554 = vld [vmem:[#allocation2 + $0x2d8] sm:$0xff]
      %v1555 = vld [vmem:[#allocation2 + $0x2e0] sm:$0xff]
      %v1556 = vld [vmem:[#allocation2 + $0x2e8] sm:$0xff]
      %v1557 = vld [vmem:[#allocation2 + $0x2f0] sm:$0xff]
      %v1558 = vld [vmem:[#allocation2 + $0x2f8] sm:$0xff]
      %v1559 = vld [vmem:[#allocation2 + $0x300] sm:$0xff]
      %v1560 = vld [vmem:[#allocation2 + $0x308] sm:$0xff]
      %v1561 = vld [vmem:[#allocation2 + $0x310] sm:$0xff]
      %v1562 = vld [vmem:[#allocation2 + $0x318] sm:$0xff]
      %v1563 = vld [vmem:[#allocation2 + $0x320] sm:$0xff]
      %v1564 = vld [vmem:[#allocation2 + $0x328] sm:$0xff]
      %v1565 = vld [vmem:[#allocation2 + $0x330] sm:$0xff]
      %v1566 = vld [vmem:[#allocation2 + $0x338] sm:$0xff]
      %v1567 = vld [vmem:[#allocation2 + $0x340] sm:$0xff]
      %v1568 = vld [vmem:[#allocation2 + $0x348] sm:$0xff]
      %v1569 = vld [vmem:[#allocation2 + $0x350] sm:$0xff]
      %v1570 = vld [vmem:[#allocation2 + $0x358] sm:$0xff]
      %v1571 = vld [vmem:[#allocation2 + $0x360] sm:$0xff]
      %v1572 = vld [vmem:[#allocation2 + $0x368] sm:$0xff]
      %v1573 = vld [vmem:[#allocation2 + $0x370] sm:$0xff]
      %v1574 = vld [vmem:[#allocation2 + $0x378] sm:$0xff]
      %v1575 = vld [vmem:[#allocation2 + $0x380] sm:$0xff]
      %v1576 = vld [vmem:[#allocation2 + $0x388] sm:$0xff]
      %v1577 = vld [vmem:[#allocation2 + $0x390] sm:$0xff]
      %v1578 = vld [vmem:[#allocation2 + $0x398] sm:$0xff]
      %v1579 = vld [vmem:[#allocation2 + $0x3a0] sm:$0xff]
      %v1580 = vld [vmem:[#allocation2 + $0x3a8] sm:$0xff]
      %v1581 = vld [vmem:[#allocation2 + $0x3b0] sm:$0xff]
      %v1582 = vld [vmem:[#allocation2 + $0x3b8] sm:$0xff]
      %v1583 = vld [vmem:[#allocation2 + $0x3c0] sm:$0xff]
      %v1584 = vld [vmem:[#allocation2 + $0x3c8] sm:$0xff]
      %v1585 = vld [vmem:[#allocation2 + $0x3d0] sm:$0xff]
      %v1586 = vld [vmem:[#allocation2 + $0x3d8] sm:$0xff]
      %v1587 = vld [vmem:[#allocation2 + $0x3e0] sm:$0xff]
      %v1588 = vld [vmem:[#allocation2 + $0x3e8] sm:$0xff]
      %v1589 = vld [vmem:[#allocation2 + $0x3f0] sm:$0xff]
      %v1590 = vld [vmem:[#allocation2 + $0x3f8] sm:$0xff]
      %v1591 = vpack.c.bf16 %v1467, %v1463
      %v1592 = vpack.c.bf16 %v1468, %v1464
      %v1593 = vpack.c.bf16 %v1469, %v1465
      %v1594 = vpack.c.bf16 %v1470, %v1466
      %v1595 = vpack.c.bf16 %v1475, %v1471
      %v1596 = vpack.c.bf16 %v1476, %v1472
      %v1597 = vpack.c.bf16 %v1477, %v1473
      %v1598 = vpack.c.bf16 %v1478, %v1474
      %v1599 = vpack.c.bf16 %v1483, %v1479
      %v1600 = vpack.c.bf16 %v1484, %v1480
      %v1601 = vpack.c.bf16 %v1485, %v1481
      %v1602 = vpack.c.bf16 %v1486, %v1482
      %v1603 = vpack.c.bf16 %v1491, %v1487
      %v1604 = vpack.c.bf16 %v1492, %v1488
      %v1605 = vpack.c.bf16 %v1493, %v1489
      %v1606 = vpack.c.bf16 %v1494, %v1490
      %v1607 = vpack.c.bf16 %v1499, %v1495
      %v1608 = vpack.c.bf16 %v1500, %v1496
      %v1609 = vpack.c.bf16 %v1501, %v1497
      %v1610 = vpack.c.bf16 %v1502, %v1498
      %v1611 = vpack.c.bf16 %v1507, %v1503
      %v1612 = vpack.c.bf16 %v1508, %v1504
      %v1613 = vpack.c.bf16 %v1509, %v1505
      %v1614 = vpack.c.bf16 %v1510, %v1506
      %v1615 = vpack.c.bf16 %v1515, %v1511
      %v1616 = vpack.c.bf16 %v1516, %v1512
      %v1617 = vpack.c.bf16 %v1517, %v1513
      %v1618 = vpack.c.bf16 %v1518, %v1514
      %v1619 = vpack.c.bf16 %v1523, %v1519
      %v1620 = vpack.c.bf16 %v1524, %v1520
      %v1621 = vpack.c.bf16 %v1525, %v1521
      %v1622 = vpack.c.bf16 %v1526, %v1522
      %v1623 = vpack.c.bf16 %v1531, %v1527
      %v1624 = vpack.c.bf16 %v1532, %v1528
      %v1625 = vpack.c.bf16 %v1533, %v1529
      %v1626 = vpack.c.bf16 %v1534, %v1530
      %v1627 = vpack.c.bf16 %v1539, %v1535
      %v1628 = vpack.c.bf16 %v1540, %v1536
      %v1629 = vpack.c.bf16 %v1541, %v1537
      %v1630 = vpack.c.bf16 %v1542, %v1538
      %v1631 = vpack.c.bf16 %v1547, %v1543
      %v1632 = vpack.c.bf16 %v1548, %v1544
      %v1633 = vpack.c.bf16 %v1549, %v1545
      %v1634 = vpack.c.bf16 %v1550, %v1546
      %v1635 = vpack.c.bf16 %v1555, %v1551
      %v1636 = vpack.c.bf16 %v1556, %v1552
      %v1637 = vpack.c.bf16 %v1557, %v1553
      %v1638 = vpack.c.bf16 %v1558, %v1554
      %v1639 = vpack.c.bf16 %v1563, %v1559
      %v1640 = vpack.c.bf16 %v1564, %v1560
      %v1641 = vpack.c.bf16 %v1565, %v1561
      %v1642 = vpack.c.bf16 %v1566, %v1562
      %v1643 = vpack.c.bf16 %v1571, %v1567
      %v1644 = vpack.c.bf16 %v1572, %v1568
      %v1645 = vpack.c.bf16 %v1573, %v1569
      %v1646 = vpack.c.bf16 %v1574, %v1570
      %v1647 = vpack.c.bf16 %v1579, %v1575
      %v1648 = vpack.c.bf16 %v1580, %v1576
      %v1649 = vpack.c.bf16 %v1581, %v1577
      %v1650 = vpack.c.bf16 %v1582, %v1578
      %v1651 = vpack.c.bf16 %v1587, %v1583
      %v1652 = vpack.c.bf16 %v1588, %v1584
      %v1653 = vpack.c.bf16 %v1589, %v1585
      %v1654 = vpack.c.bf16 %v1590, %v1586
      %v1655 = vld [vmem:[%s2] sm:$0xff]
      %v1657 = vunpack.c.l.b16 %v1655
      %v1658 = vunpack.c.h.b16 %v1655
      %v1659 = vpack.c.b16 %v1657, %v1657
      %v1660 = vpack.c.b16 %v1658, %v1658
      %1663 = vmatprep.subr.bf16.mxu0 %v1620
      %1664 = vmatpush1.bf16.msra.mxu0 %v1619
      %1665 = vmatprep.subr.bf16.mxu0 %v1616
      %1666 = vmatpush1.bf16.msra.mxu0 %v1615
      %1667 = vmatprep.subr.bf16.mxu0 %v1612
      %1668 = vmatpush1.bf16.msra.mxu0 %v1611
      %1669 = vmatprep.subr.bf16.mxu0 %v1608
      %1670 = vmatpush1.bf16.msra.mxu0 %v1607
      %1671 = vmatprep.subr.bf16.mxu0 %v1604
      %1672 = vmatpush1.bf16.msra.mxu0 %v1603
      %1673 = vmatprep.subr.bf16.mxu0 %v1600
      %1674 = vmatpush1.bf16.msra.mxu0 %v1599
      %1675 = vmatprep.subr.bf16.mxu0 %v1596
      %1676 = vmatpush1.bf16.msra.mxu0 %v1595
      %1677 = vmatprep.subr.bf16.mxu0 %v1592
      %1678 = vmatpush1.bf16.msra.mxu0 %v1591
      %1679 = vmatprep.subr.bf16.mxu0 %v1652
      %1680 = vmatpush2.bf16.msra.mxu0 %v1651
      %1681 = vmatprep.subr.bf16.mxu0 %v1648
      %1682 = vmatpush2.bf16.msra.mxu0 %v1647
      %1683 = vmatprep.subr.bf16.mxu0 %v1644
      %1684 = vmatpush2.bf16.msra.mxu0 %v1643
      %1685 = vmatprep.subr.bf16.mxu0 %v1640
      %1686 = vmatpush2.bf16.msra.mxu0 %v1639
      %1687 = vmatprep.subr.bf16.mxu0 %v1636
      %1688 = vmatpush2.bf16.msra.mxu0 %v1635
      %1689 = vmatprep.subr.bf16.mxu0 %v1632
      %1690 = vmatpush2.bf16.msra.mxu0 %v1631
      %1691 = vmatprep.subr.bf16.mxu0 %v1628
      %1692 = vmatpush2.bf16.msra.mxu0 %v1627
      %1693 = vmatprep.subr.bf16.mxu0 %v1624
      %1694 = vmatpush2.bf16.msra.mxu0 %v1623
      %1695 = vmatprep.mubr.bf16.mxu0 %v1660
      %1696 = vmatmul.mubr.bf16.gmra.mxu0 %v1659
      %v1697 = vpop.f32.mrf.mxu0
      %v1698 = vadd.f32 0.0, %v1697
      %v1699 = vpop.f32.mrf.mxu0
      %v1700 = vadd.f32 0.0, %v1699
      %v1701 = vpop.f32.mrf.mxu0
      %v1702 = vpop.f32.mrf.mxu0
      %1703 = vdwg.mxu0
      %1704 = vmatprep.subr.bf16.mxu0 %v1622
      %1705 = vmatpush1.bf16.msra.mxu0 %v1621
      %1706 = vmatprep.subr.bf16.mxu0 %v1618
      %1707 = vmatpush1.bf16.msra.mxu0 %v1617
      %1708 = vmatprep.subr.bf16.mxu0 %v1614
      %1709 = vmatpush1.bf16.msra.mxu0 %v1613
      %1710 = vmatprep.subr.bf16.mxu0 %v1610
      %1711 = vmatpush1.bf16.msra.mxu0 %v1609
      %1712 = vmatprep.subr.bf16.mxu0 %v1606
      %1713 = vmatpush1.bf16.msra.mxu0 %v1605
      %1714 = vmatprep.subr.bf16.mxu0 %v1602
      %1715 = vmatpush1.bf16.msra.mxu0 %v1601
      %1716 = vmatprep.subr.bf16.mxu0 %v1598
      %1717 = vmatpush1.bf16.msra.mxu0 %v1597
      %1718 = vmatprep.subr.bf16.mxu0 %v1594
      %1719 = vmatpush1.bf16.msra.mxu0 %v1593
      %1720 = vmatprep.subr.bf16.mxu0 %v1654
      %1721 = vmatpush2.bf16.msra.mxu0 %v1653
      %1722 = vmatprep.subr.bf16.mxu0 %v1650
      %1723 = vmatpush2.bf16.msra.mxu0 %v1649
      %1724 = vmatprep.subr.bf16.mxu0 %v1646
      %1725 = vmatpush2.bf16.msra.mxu0 %v1645
      %1726 = vmatprep.subr.bf16.mxu0 %v1642
      %1727 = vmatpush2.bf16.msra.mxu0 %v1641
      %1728 = vmatprep.subr.bf16.mxu0 %v1638
      %1729 = vmatpush2.bf16.msra.mxu0 %v1637
      %1730 = vmatprep.subr.bf16.mxu0 %v1634
      %1731 = vmatpush2.bf16.msra.mxu0 %v1633
      %1732 = vmatprep.subr.bf16.mxu0 %v1630
      %1733 = vmatpush2.bf16.msra.mxu0 %v1629
      %1734 = vmatprep.subr.bf16.mxu0 %v1626
      %1735 = vmatpush2.bf16.msra.mxu0 %v1625
      %1736 = vmatprep.mubr.bf16.mxu0 %v1660
      %1737 = vmatmul.mubr.bf16.gmra.mxu0 %v1659
      %v1738 = vpop.f32.mrf.mxu0
      %v1739 = vadd.f32 0.0, %v1738
      %v1740 = vpop.f32.mrf.mxu0
      %v1741 = vadd.f32 0.0, %v1740
      %v1742 = vpop.f32.mrf.mxu0
      %v1743 = vpop.f32.mrf.mxu0
      %1744 = vdwg.mxu0
      %v1745 = vmax.f32 %v1698, 0.0
      %v1746 = vmax.f32 %v1700, 0.0
      %v1747 = vmax.f32 %v1739, 0.0
      %v1748 = vmax.f32 %v1741, 0.0
      %1749 = vst [vmem:[%s170] sm:$0xff] %v1745
      %1750 = vst [vmem:[%s170 + $0x8] sm:$0xff] %v1746
      %1751 = vst [vmem:[%s170 + $0x10] sm:$0xff] %v1747
      %1752 = vst [vmem:[%s170 + $0x18] sm:$0xff] %v1748
      %p1753 = scmp.lt.s32.totalorder %s14, 1
      %s1754 = scalar_select %p1753, %s14, 1
      %s1755 = smul.addr %s1754, 4
      %s1756 = smul.addr %s1755, 8
      %s1757 = scalar_lea.vmem %s3, %s1756
      // Predicated region
      $region33: #{up_block_forward.1} parent=31 // pred_check
        %p1758 = pneg %p100
      $region34: #{up_block_forward.1} parent=31 // pred_check_branch
        %1760 = sbr.rel (%p1758) target = $region36
      $region35: #{up_block_forward.1} parent=31 // pred_region
        _
      $region36: #{up_block_forward.1} parent=31 // pred_fallthru
        _
    $region32: #{up_block_forward.1} parent=5 // pred_fallthru
      _
    %p1761 = scmp.le.s32.totalorder 2, %s9
    // Predicated region
    $region37: #{up_block_forward.1} parent=5 // pred_check
      %p1762 = pneg %p1761
    $region38: #{up_block_forward.1} parent=5 // pred_check_branch
      %1764 = sbr.rel (%p1762) target = $region40
    $region39: #{up_block_forward.1} parent=5 // pred_region
      %s1765 = ssub.s32 %s9, 2
      // Predicated region
      $region41: #{up_block_forward.1} parent=39 // pred_check
        %p1766 = pneg %p106
      $region42: #{up_block_forward.1} parent=39 // pred_check_branch
        %1768 = sbr.rel (%p1766) target = $region44
      $region43: #{up_block_forward.1} parent=39 // pred_region
        %p1769 = scmp.lt.s32.totalorder %s15, 1
        %s1770 = scalar_select %p1769, %s15, 1
        %s1771 = smul.addr %s1770, 4
        %s1772 = smul.addr %s1771, 8
        %s1773 = scalar_lea.vmem %s3, %s1772
      $region44: #{up_block_forward.1} parent=39 // pred_fallthru
        _
    $region40: #{up_block_forward.1} parent=5 // pred_fallthru
      _
  $region6: #{up_block_forward.1} parent=0 // loop_footer
    %s13 = sadd.s32 1, %s9
  $region7: #{up_block_forward.1} parent=0 // loop_footer_branch
    %8 = sbr.rel target = $region3
  $region8: #{up_block_forward.1} parent=0 // loop_exit
    _

</llo_original>
